<compile_context>
chip_gen: v6e
topology: v6e:2x2x1
jax: 0.10.0
libtpu: 0.0.40
codegen_flags: <defaults>
</compile_context>

<pallas_src>
from functools import partial

import jax
import jax.numpy as jnp
from jax.experimental import pallas as pl
from jax.experimental.pallas import tpu as pltpu


# ---------------------------------------------------------------------------
# Pass 1: pointwise_conv1 + GLU + depthwise conv + BN-statistics accumulation
# ---------------------------------------------------------------------------
def _pass1_kernel(x_ref, w1a_ref, b1a_ref, w1b_ref, b1b_ref, wd_ref, bd_ref,
                  z_ref, stats_ref, gpad_ref, *, T: int, pad: int):
    i = pl.program_id(0)
    TM, D = x_ref.shape
    S = TM // T                       # whole sequences in this row tile
    K = wd_ref.shape[0]

    @pl.when(i == 0)
    def _():
        stats_ref[...] = jnp.zeros_like(stats_ref)   # grid-resident accumulator
        gpad_ref[...] = jnp.zeros_like(gpad_ref)     # pad rows stay zero forever

    # pointwise_conv1 split into (linear, gate) halves; bf16 on the MXU,
    # f32 accumulation.  GLU = linear * sigmoid(gate), all elementwise in f32.
    xb = x_ref[...].astype(jnp.bfloat16)
    a = jnp.dot(xb, w1a_ref[...], preferred_element_type=jnp.float32) + b1a_ref[...]
    b = jnp.dot(xb, w1b_ref[...], preferred_element_type=jnp.float32) + b1b_ref[...]
    g = a * jax.nn.sigmoid(b)                         # (TM, D) f32

    wd = wd_ref[...]                                  # (K, D) hoisted once
    bd = bd_ref[...]                                  # (1, D)

    zsum = jnp.zeros((1, D), jnp.float32)
    zsq = jnp.zeros((1, D), jnp.float32)
    for s in range(S):                                # S, K small & static: unrolled
        # depthwise conv ('same' zero padding per sequence): write this
        # sequence's GLU output into the middle of the zero-padded scratch and
        # accumulate K static sublane-offset slices (vld slots, no XLU rolls,
        # no compare/select masks).
        gpad_ref[pad:pad + T, :] = g[s * T:(s + 1) * T, :]
        z_s = gpad_ref[0:T, :] * wd[0:1, :]
        for k in range(1, K):
            z_s = z_s + gpad_ref[k:k + T, :] * wd[k:k + 1, :]
        z_s = z_s + bd
        z_ref[s * T:(s + 1) * T, :] = z_s

        # per-channel BatchNorm statistics for this sequence
        zsum = zsum + jnp.sum(z_s, axis=0, keepdims=True)
        zsq = zsq + jnp.sum(z_s * z_s, axis=0, keepdims=True)

    # accumulate across row tiles (stats block index is constant over the grid)
    stats_ref[0:1, :] = stats_ref[0:1, :] + zsum
    stats_ref[1:2, :] = stats_ref[1:2, :] + zsq


# ---------------------------------------------------------------------------
# Pass 2: BatchNorm (precomputed scale/shift) + ReLU + pointwise_conv2
# ---------------------------------------------------------------------------
def _pass2_kernel(z_ref, scale_ref, shift_ref, w2_ref, b2_ref, o_ref):
    zn = z_ref[...] * scale_ref[...] + shift_ref[...]     # BatchNorm (batch stats)
    r = jnp.maximum(zn, 0.0)                              # ReLU
    out = jnp.dot(r.astype(jnp.bfloat16), w2_ref[...],
                  preferred_element_type=jnp.float32) + b2_ref[...]
    o_ref[...] = out.astype(o_ref.dtype)


def conformer_convolution(x, params, kernel_size, *, target_rows=256, eps=1e-5):
    """x: (B, T, D) -> (out: (B, T, D), cache: None).  Defaults (non-causal) path."""
    B, T, D = x.shape
    K = kernel_size
    pad = (K - 1) // 2
    N = B * T

    # Whole sequences per row tile so depthwise taps never cross a tile
    # boundary.  target_rows ~256 suits v5e's 128x128 MXU / 16 MiB scoped VMEM;
    # sweep up to 512 on v6e, and re-derive (roughly halve) for v7x's 64 MiB
    # physical VMEM at large D.
    S = max(1, min(B, target_rows // max(T, 1)))
    while B % S:
        S -= 1
    TM = S * T
    n_tiles = B // S
    assert TM % 8 == 0 or n_tiles == 1, "row tile must be sublane-aligned (S*T % 8 == 0)"

    x2 = x.reshape(N, D)
    bf16 = jnp.bfloat16
    w1a = params["w1a"].astype(bf16)
    w1b = params["w1b"].astype(bf16)
    w2 = params["w2"].astype(bf16)

    row = lambda i: (i, 0)
    const = lambda i: (0, 0)
    vmem_limit = 32 * 1024 * 1024

    # ---- pass 1: z tiles + per-channel (sum, sum_sq) ----------------------
    z, stats = pl.pallas_call(
        partial(_pass1_kernel, T=T, pad=pad),
        out_shape=(jax.ShapeDtypeStruct((N, D), jnp.float32),
                   jax.ShapeDtypeStruct((2, D), jnp.float32)),
        grid_spec=pltpu.PrefetchScalarGridSpec(
            num_scalar_prefetch=0,
            grid=(n_tiles,),
            in_specs=[pl.BlockSpec((TM, D), row),
                      pl.BlockSpec((D, D), const), pl.BlockSpec((1, D), const),
                      pl.BlockSpec((D, D), const), pl.BlockSpec((1, D), const),
                      pl.BlockSpec((K, D), const), pl.BlockSpec((1, D), const)],
            out_specs=(pl.BlockSpec((TM, D), row),
                       pl.BlockSpec((2, D), const)),
            scratch_shapes=[pltpu.VMEM((T + 2 * pad, D), jnp.float32)]),
        compiler_params=pltpu.CompilerParams(
            # stats accumulator is grid-resident -> this axis must be arbitrary
            dimension_semantics=("arbitrary",),
            vmem_limit_bytes=vmem_limit),
    )(x2, w1a, params["b1a"], w1b, params["b1b"], params["wd"], params["bd"])

    # Tiny per-channel epilogue in plain JAX: fold BN into scale/shift.
    mean = stats[0:1, :] / N
    var = stats[1:2, :] / N - mean * mean                 # biased (training-mode) var
    scale = params["gamma"] * jax.lax.rsqrt(var + eps)    # (1, D)
    shift = params["beta"] - mean * scale                 # (1, D)

    # ---- pass 2: normalize + ReLU + pointwise_conv2 -----------------------
    out = pl.pallas_call(
        _pass2_kernel,
        out_shape=jax.ShapeDtypeStruct((N, D), x.dtype),
        grid_spec=pltpu.PrefetchScalarGridSpec(
            num_scalar_prefetch=0,
            grid=(n_tiles,),
            in_specs=[pl.BlockSpec((TM, D), row),
                      pl.BlockSpec((1, D), const), pl.BlockSpec((1, D), const),
                      pl.BlockSpec((D, D), const), pl.BlockSpec((1, D), const)],
            out_specs=pl.BlockSpec((TM, D), row)),
        compiler_params=pltpu.CompilerParams(
            dimension_semantics=("parallel",),            # v7x megacore splits tiles
            vmem_limit_bytes=vmem_limit),
    )(z, scale, shift, w2, params["b2"])

    return out.reshape(B, T, D), None  # non-causal: cache passes through unchanged


# ---------------------------------------------------------------------------
# Parameters and pure-JAX reference
# ---------------------------------------------------------------------------
def init_params(key, channels, kernel_size):
    D, K = channels, kernel_size
    ks = jax.random.split(key, 8)
    s = 0.1
    # pointwise_conv1 weight (2D, D, 1) is stored pre-split into the GLU
    # linear half (w1a/b1a == channels [0, D)) and gate half (w1b/b1b == [D, 2D)).
    return {
        "w1a":   (s * jax.random.normal(ks[0], (D, D))).astype(jnp.float32),
        "b1a":   (s * jax.random.normal(ks[1], (1, D))).astype(jnp.float32),
        "w1b":   (s * jax.random.normal(ks[2], (D, D))).astype(jnp.float32),
        "b1b":   (s * jax.random.normal(ks[3], (1, D))).astype(jnp.float32),
        "wd":    (s * jax.random.normal(ks[4], (K, D))).astype(jnp.float32),
        "bd":    (s * jax.random.normal(ks[5], (1, D))).astype(jnp.float32),
        "gamma": jnp.ones((1, D), jnp.float32),
        "beta":  jnp.zeros((1, D), jnp.float32),
        "w2":    (s * jax.random.normal(ks[6], (D, D))).astype(jnp.float32),
        "b2":    (s * jax.random.normal(ks[7], (1, D))).astype(jnp.float32),
    }


def ref_forward(x, p, kernel_size, matmul_dtype=jnp.float32):
    """Pure-JAX reference of the PyTorch forward (defaults path).

    matmul_dtype=bfloat16 mirrors the kernel's MXU numerics (f32 accumulation);
    matmul_dtype=float32 is the exact PyTorch-equivalent computation.
    """
    B, T, D = x.shape
    K = kernel_size
    pad = (K - 1) // 2
    md = matmul_dtype
    xa = x.astype(md)
    a = jnp.einsum("btd,dc->btc", xa, p["w1a"].astype(md),
                   preferred_element_type=jnp.float32) + p["b1a"][0]
    b = jnp.einsum("btd,dc->btc", xa, p["w1b"].astype(md),
                   preferred_element_type=jnp.float32) + p["b1b"][0]
    g = a * jax.nn.sigmoid(b)
    gp = jnp.pad(g, ((0, 0), (pad, pad), (0, 0)))
    z = sum(gp[:, k:k + T, :] * p["wd"][k] for k in range(K)) + p["bd"][0]
    mean = z.mean(axis=(0, 1))
    var = ((z - mean) ** 2).mean(axis=(0, 1))
    zn = (z - mean) * jax.lax.rsqrt(var + 1e-5) * p["gamma"][0] + p["beta"][0]
    r = jnp.maximum(zn, 0.0)
    return jnp.einsum("btd,dc->btc", r.astype(md), p["w2"].astype(md),
                      preferred_element_type=jnp.float32) + p["b2"][0]


if __name__ == "__main__":
    # Small but lane-dense config: D=128 keeps the lanes full and the output
    # stores unmasked; T=64 gives sublane-aligned whole-sequence tiles.
    B, T, D, K = 8, 64, 128, 7          # kernel_size=7 satisfies (K-1) % 2 == 0
    key = jax.random.PRNGKey(0)
    kx, kp = jax.random.split(key)
    x = jax.random.normal(kx, (B, T, D), dtype=jnp.float32)
    params = init_params(kp, D, K)

    out, cache = conformer_convolution(x, params, K)
    out = jax.block_until_ready(out)
    assert out.shape == (B, T, D)

    # Tight check vs a reference that mirrors the kernel's bf16-MXU numerics.
    ref_b = jax.block_until_ready(ref_forward(x, params, K, matmul_dtype=jnp.bfloat16))
    err_b = float(jnp.abs(out - ref_b).max())
    assert jnp.allclose(out, ref_b, atol=2e-3, rtol=2e-3), err_b

    # Sanity check vs the exact f32 PyTorch-equivalent reference (bf16 matmul noise).
    ref_f = jax.block_until_ready(ref_forward(x, params, K, matmul_dtype=jnp.float32))
    err_f = float(jnp.abs(out - ref_f).max())
    assert jnp.allclose(out, ref_f, atol=5e-2, rtol=5e-2), err_f

    print("KERNEL_OK")
</pallas_src>

<mosaic_0001>
module attributes {stable_mosaic.version = 11 : i64} {
  func.func @_pass1_kernel(%arg0: i32, %arg1: memref<256x128xf32, #tpu.memory_space<vmem>>, %arg2: memref<128x128xbf16, #tpu.memory_space<vmem>>, %arg3: memref<1x128xf32, #tpu.memory_space<vmem>>, %arg4: memref<128x128xbf16, #tpu.memory_space<vmem>>, %arg5: memref<1x128xf32, #tpu.memory_space<vmem>>, %arg6: memref<7x128xf32, #tpu.memory_space<vmem>>, %arg7: memref<1x128xf32, #tpu.memory_space<vmem>>, %arg8: memref<256x128xf32, #tpu.memory_space<vmem>>, %arg9: memref<2x128xf32, #tpu.memory_space<vmem>>, %arg10: memref<70x128xf32, #tpu.memory_space<vmem>>) attributes {dimension_semantics = [#tpu.dimension_semantics<arbitrary>], iteration_bounds = array<i64: 2>, scalar_prefetch = 0 : i64, scratch_operands = 1 : i64, tpu.core_type = #tpu.core_type<tc>, window_params = [{transform_indices = @transform_0, window_bounds = array<i64: 256, 128>}, {pipeline_mode = #tpu.pipeline_mode<synchronous>, transform_indices = @transform_1, window_bounds = array<i64: 128, 128>}, {pipeline_mode = #tpu.pipeline_mode<synchronous>, transform_indices = @transform_2, window_bounds = array<i64: 1, 128>}, {pipeline_mode = #tpu.pipeline_mode<synchronous>, transform_indices = @transform_3, window_bounds = array<i64: 128, 128>}, {pipeline_mode = #tpu.pipeline_mode<synchronous>, transform_indices = @transform_4, window_bounds = array<i64: 1, 128>}, {pipeline_mode = #tpu.pipeline_mode<synchronous>, transform_indices = @transform_5, window_bounds = array<i64: 7, 128>}, {pipeline_mode = #tpu.pipeline_mode<synchronous>, transform_indices = @transform_6, window_bounds = array<i64: 1, 128>}, {transform_indices = @transform_7, window_bounds = array<i64: 256, 128>}, {pipeline_mode = #tpu.pipeline_mode<synchronous>, transform_indices = @transform_8, window_bounds = array<i64: 2, 128>}]} {
    %c0_i32 = arith.constant 0 : i32
    %0 = arith.cmpi eq, %arg0, %c0_i32 : i32
    %1 = arith.extui %0 : i1 to i32
    %c0_i32_0 = arith.constant 0 : i32
    %2 = arith.cmpi ne, %1, %c0_i32_0 : i32
    scf.if %2 {
      %cst_97 = arith.constant 0.000000e+00 : f32
      %215 = vector.broadcast %cst_97 : f32 to vector<2x128xf32>
      %c0_98 = arith.constant 0 : index
      %c0_99 = arith.constant 0 : index
      %216 = vector.load %arg9[%c0_98, %c0_99] : memref<2x128xf32, #tpu.memory_space<vmem>>, vector<2x128xf32>
      tpu.vector_store %arg9[%c0_98, %c0_99], %215 {strides = array<i32>} : memref<2x128xf32, #tpu.memory_space<vmem>>, vector<2x128xf32>,
      %cst_100 = arith.constant 0.000000e+00 : f32
      %217 = vector.broadcast %cst_100 : f32 to vector<70x128xf32>
      %c0_101 = arith.constant 0 : index
      %c0_102 = arith.constant 0 : index
      %218 = vector.load %arg10[%c0_101, %c0_102] : memref<70x128xf32, #tpu.memory_space<vmem>>, vector<70x128xf32>
      tpu.vector_store %arg10[%c0_101, %c0_102], %217 {strides = array<i32>} : memref<70x128xf32, #tpu.memory_space<vmem>>, vector<70x128xf32>,
    } else {
    }
    %c0 = arith.constant 0 : index
    %c0_1 = arith.constant 0 : index
    %3 = vector.load %arg1[%c0, %c0_1] : memref<256x128xf32, #tpu.memory_space<vmem>>, vector<256x128xf32>
    %4 = arith.truncf %3 : vector<256x128xf32> to vector<256x128xbf16>
    %c0_2 = arith.constant 0 : index
    %c0_3 = arith.constant 0 : index
    %5 = vector.load %arg2[%c0_2, %c0_3] : memref<128x128xbf16, #tpu.memory_space<vmem>>, vector<128x128xbf16>
    %cst = arith.constant dense<0.000000e+00> : vector<256x128xf32>
    %6 = tpu.matmul %4, %5, %cst {dimension_numbers = #tpu.dot_dimension_numbers<[1], [0], [0], [1], [0, 0, 1, 1], [], []>} : vector<256x128xbf16>, vector<128x128xbf16>, vector<256x128xf32> -> vector<256x128xf32>
    %c0_4 = arith.constant 0 : index
    %c0_5 = arith.constant 0 : index
    %7 = vector.load %arg3[%c0_4, %c0_5] : memref<1x128xf32, #tpu.memory_space<vmem>>, vector<1x128xf32>
    %8 = vector.broadcast %7 : vector<1x128xf32> to vector<256x128xf32>
    %9 = arith.addf %6, %8 : vector<256x128xf32>
    %c0_6 = arith.constant 0 : index
    %c0_7 = arith.constant 0 : index
    %10 = vector.load %arg4[%c0_6, %c0_7] : memref<128x128xbf16, #tpu.memory_space<vmem>>, vector<128x128xbf16>
    %cst_8 = arith.constant dense<0.000000e+00> : vector<256x128xf32>
    %11 = tpu.matmul %4, %10, %cst_8 {dimension_numbers = #tpu.dot_dimension_numbers<[1], [0], [0], [1], [0, 0, 1, 1], [], []>} : vector<256x128xbf16>, vector<128x128xbf16>, vector<256x128xf32> -> vector<256x128xf32>
    %c0_9 = arith.constant 0 : index
    %c0_10 = arith.constant 0 : index
    %12 = vector.load %arg5[%c0_9, %c0_10] : memref<1x128xf32, #tpu.memory_space<vmem>>, vector<1x128xf32>
    %13 = vector.broadcast %12 : vector<1x128xf32> to vector<256x128xf32>
    %14 = arith.addf %11, %13 : vector<256x128xf32>
    %15 = arith.negf %14 : vector<256x128xf32>
    %16 = math.exp %15 : vector<256x128xf32>
    %cst_11 = arith.constant 1.000000e+00 : f32
    %17 = vector.broadcast %cst_11 : f32 to vector<256x128xf32>
    %18 = arith.addf %17, %16 : vector<256x128xf32>
    %19 = arith.divf %17, %18 : vector<256x128xf32>
    %20 = arith.mulf %9, %19 : vector<256x128xf32>
    %c0_12 = arith.constant 0 : index
    %c0_13 = arith.constant 0 : index
    %21 = vector.load %arg6[%c0_12, %c0_13] : memref<7x128xf32, #tpu.memory_space<vmem>>, vector<7x128xf32>
    %c0_14 = arith.constant 0 : index
    %c0_15 = arith.constant 0 : index
    %22 = vector.load %arg7[%c0_14, %c0_15] : memref<1x128xf32, #tpu.memory_space<vmem>>, vector<1x128xf32>
    %cst_16 = arith.constant 0.000000e+00 : f32
    %23 = vector.broadcast %cst_16 : f32 to vector<1x128xf32>
    %cst_17 = arith.constant 0.000000e+00 : f32
    %24 = vector.broadcast %cst_17 : f32 to vector<1x128xf32>
    %25 = vector.extract_strided_slice %20 {offsets = [0, 0], sizes = [64, 128], strides = [1, 1]} : vector<256x128xf32> to vector<64x128xf32>
    %c3 = arith.constant 3 : index
    %c0_18 = arith.constant 0 : index
    %26 = vector.load %arg10[%c3, %c0_18] : memref<70x128xf32, #tpu.memory_space<vmem>>, vector<64x128xf32>
    tpu.vector_store %arg10[%c3, %c0_18], %25 {strides = array<i32>} : memref<70x128xf32, #tpu.memory_space<vmem>>, vector<64x128xf32>,
    %c0_19 = arith.constant 0 : index
    %c0_20 = arith.constant 0 : index
    %27 = vector.load %arg10[%c0_19, %c0_20] : memref<70x128xf32, #tpu.memory_space<vmem>>, vector<64x128xf32>
    %28 = vector.extract_strided_slice %21 {offsets = [0, 0], sizes = [1, 128], strides = [1, 1]} : vector<7x128xf32> to vector<1x128xf32>
    %29 = vector.broadcast %28 : vector<1x128xf32> to vector<64x128xf32>
    %30 = arith.mulf %27, %29 : vector<64x128xf32>
    %c1 = arith.constant 1 : index
    %c0_21 = arith.constant 0 : index
    %31 = vector.load %arg10[%c1, %c0_21] : memref<70x128xf32, #tpu.memory_space<vmem>>, vector<64x128xf32>
    %32 = vector.extract_strided_slice %21 {offsets = [1, 0], sizes = [1, 128], strides = [1, 1]} : vector<7x128xf32> to vector<1x128xf32>
    %33 = vector.broadcast %32 : vector<1x128xf32> to vector<64x128xf32>
    %34 = arith.mulf %31, %33 : vector<64x128xf32>
    %35 = arith.addf %30, %34 : vector<64x128xf32>
    %c2 = arith.constant 2 : index
    %c0_22 = arith.constant 0 : index
    %36 = vector.load %arg10[%c2, %c0_22] : memref<70x128xf32, #tpu.memory_space<vmem>>, vector<64x128xf32>
    %37 = vector.extract_strided_slice %21 {offsets = [2, 0], sizes = [1, 128], strides = [1, 1]} : vector<7x128xf32> to vector<1x128xf32>
    %38 = vector.broadcast %37 : vector<1x128xf32> to vector<64x128xf32>
    %39 = arith.mulf %36, %38 : vector<64x128xf32>
    %40 = arith.addf %35, %39 : vector<64x128xf32>
    %c3_23 = arith.constant 3 : index
    %c0_24 = arith.constant 0 : index
    %41 = vector.load %arg10[%c3_23, %c0_24] : memref<70x128xf32, #tpu.memory_space<vmem>>, vector<64x128xf32>
    %42 = vector.extract_strided_slice %21 {offsets = [3, 0], sizes = [1, 128], strides = [1, 1]} : vector<7x128xf32> to vector<1x128xf32>
    %43 = vector.broadcast %42 : vector<1x128xf32> to vector<64x128xf32>
    %44 = arith.mulf %41, %43 : vector<64x128xf32>
    %45 = arith.addf %40, %44 : vector<64x128xf32>
    %c4 = arith.constant 4 : index
    %c0_25 = arith.constant 0 : index
    %46 = vector.load %arg10[%c4, %c0_25] : memref<70x128xf32, #tpu.memory_space<vmem>>, vector<64x128xf32>
    %47 = vector.extract_strided_slice %21 {offsets = [4, 0], sizes = [1, 128], strides = [1, 1]} : vector<7x128xf32> to vector<1x128xf32>
    %48 = vector.broadcast %47 : vector<1x128xf32> to vector<64x128xf32>
    %49 = arith.mulf %46, %48 : vector<64x128xf32>
    %50 = arith.addf %45, %49 : vector<64x128xf32>
    %c5 = arith.constant 5 : index
    %c0_26 = arith.constant 0 : index
    %51 = vector.load %arg10[%c5, %c0_26] : memref<70x128xf32, #tpu.memory_space<vmem>>, vector<64x128xf32>
    %52 = vector.extract_strided_slice %21 {offsets = [5, 0], sizes = [1, 128], strides = [1, 1]} : vector<7x128xf32> to vector<1x128xf32>
    %53 = vector.broadcast %52 : vector<1x128xf32> to vector<64x128xf32>
    %54 = arith.mulf %51, %53 : vector<64x128xf32>
    %55 = arith.addf %50, %54 : vector<64x128xf32>
    %c6 = arith.constant 6 : index
    %c0_27 = arith.constant 0 : index
    %56 = vector.load %arg10[%c6, %c0_27] : memref<70x128xf32, #tpu.memory_space<vmem>>, vector<64x128xf32>
    %57 = vector.extract_strided_slice %21 {offsets = [6, 0], sizes = [1, 128], strides = [1, 1]} : vector<7x128xf32> to vector<1x128xf32>
    %58 = vector.broadcast %57 : vector<1x128xf32> to vector<64x128xf32>
    %59 = arith.mulf %56, %58 : vector<64x128xf32>
    %60 = arith.addf %55, %59 : vector<64x128xf32>
    %61 = vector.broadcast %22 : vector<1x128xf32> to vector<64x128xf32>
    %62 = arith.addf %60, %61 : vector<64x128xf32>
    %c0_28 = arith.constant 0 : index
    %c0_29 = arith.constant 0 : index
    %63 = vector.load %arg8[%c0_28, %c0_29] : memref<256x128xf32, #tpu.memory_space<vmem>>, vector<64x128xf32>
    tpu.vector_store %arg8[%c0_28, %c0_29], %62 {strides = array<i32>} : memref<256x128xf32, #tpu.memory_space<vmem>>, vector<64x128xf32>,
    %cst_30 = arith.constant dense<0.000000e+00> : vector<128xf32>
    %64 = vector.multi_reduction <add>, %62, %cst_30 [0] : vector<64x128xf32> to vector<128xf32>
    %65 = vector.shape_cast %64 : vector<128xf32> to vector<1x128xf32>
    %66 = arith.addf %23, %65 : vector<1x128xf32>
    %67 = arith.mulf %62, %62 : vector<64x128xf32>
    %cst_31 = arith.constant dense<0.000000e+00> : vector<128xf32>
    %68 = vector.multi_reduction <add>, %67, %cst_31 [0] : vector<64x128xf32> to vector<128xf32>
    %69 = vector.shape_cast %68 : vector<128xf32> to vector<1x128xf32>
    %70 = arith.addf %24, %69 : vector<1x128xf32>
    %71 = vector.extract_strided_slice %20 {offsets = [64, 0], sizes = [64, 128], strides = [1, 1]} : vector<256x128xf32> to vector<64x128xf32>
    %c3_32 = arith.constant 3 : index
    %c0_33 = arith.constant 0 : index
    %72 = vector.load %arg10[%c3_32, %c0_33] : memref<70x128xf32, #tpu.memory_space<vmem>>, vector<64x128xf32>
    tpu.vector_store %arg10[%c3_32, %c0_33], %71 {strides = array<i32>} : memref<70x128xf32, #tpu.memory_space<vmem>>, vector<64x128xf32>,
    %c0_34 = arith.constant 0 : index
    %c0_35 = arith.constant 0 : index
    %73 = vector.load %arg10[%c0_34, %c0_35] : memref<70x128xf32, #tpu.memory_space<vmem>>, vector<64x128xf32>
    %74 = vector.extract_strided_slice %21 {offsets = [0, 0], sizes = [1, 128], strides = [1, 1]} : vector<7x128xf32> to vector<1x128xf32>
    %75 = vector.broadcast %74 : vector<1x128xf32> to vector<64x128xf32>
    %76 = arith.mulf %73, %75 : vector<64x128xf32>
    %c1_36 = arith.constant 1 : index
    %c0_37 = arith.constant 0 : index
    %77 = vector.load %arg10[%c1_36, %c0_37] : memref<70x128xf32, #tpu.memory_space<vmem>>, vector<64x128xf32>
    %78 = vector.extract_strided_slice %21 {offsets = [1, 0], sizes = [1, 128], strides = [1, 1]} : vector<7x128xf32> to vector<1x128xf32>
    %79 = vector.broadcast %78 : vector<1x128xf32> to vector<64x128xf32>
    %80 = arith.mulf %77, %79 : vector<64x128xf32>
    %81 = arith.addf %76, %80 : vector<64x128xf32>
    %c2_38 = arith.constant 2 : index
    %c0_39 = arith.constant 0 : index
    %82 = vector.load %arg10[%c2_38, %c0_39] : memref<70x128xf32, #tpu.memory_space<vmem>>, vector<64x128xf32>
    %83 = vector.extract_strided_slice %21 {offsets = [2, 0], sizes = [1, 128], strides = [1, 1]} : vector<7x128xf32> to vector<1x128xf32>
    %84 = vector.broadcast %83 : vector<1x128xf32> to vector<64x128xf32>
    %85 = arith.mulf %82, %84 : vector<64x128xf32>
    %86 = arith.addf %81, %85 : vector<64x128xf32>
    %c3_40 = arith.constant 3 : index
    %c0_41 = arith.constant 0 : index
    %87 = vector.load %arg10[%c3_40, %c0_41] : memref<70x128xf32, #tpu.memory_space<vmem>>, vector<64x128xf32>
    %88 = vector.extract_strided_slice %21 {offsets = [3, 0], sizes = [1, 128], strides = [1, 1]} : vector<7x128xf32> to vector<1x128xf32>
    %89 = vector.broadcast %88 : vector<1x128xf32> to vector<64x128xf32>
    %90 = arith.mulf %87, %89 : vector<64x128xf32>
    %91 = arith.addf %86, %90 : vector<64x128xf32>
    %c4_42 = arith.constant 4 : index
    %c0_43 = arith.constant 0 : index
    %92 = vector.load %arg10[%c4_42, %c0_43] : memref<70x128xf32, #tpu.memory_space<vmem>>, vector<64x128xf32>
    %93 = vector.extract_strided_slice %21 {offsets = [4, 0], sizes = [1, 128], strides = [1, 1]} : vector<7x128xf32> to vector<1x128xf32>
    %94 = vector.broadcast %93 : vector<1x128xf32> to vector<64x128xf32>
    %95 = arith.mulf %92, %94 : vector<64x128xf32>
    %96 = arith.addf %91, %95 : vector<64x128xf32>
    %c5_44 = arith.constant 5 : index
    %c0_45 = arith.constant 0 : index
    %97 = vector.load %arg10[%c5_44, %c0_45] : memref<70x128xf32, #tpu.memory_space<vmem>>, vector<64x128xf32>
    %98 = vector.extract_strided_slice %21 {offsets = [5, 0], sizes = [1, 128], strides = [1, 1]} : vector<7x128xf32> to vector<1x128xf32>
    %99 = vector.broadcast %98 : vector<1x128xf32> to vector<64x128xf32>
    %100 = arith.mulf %97, %99 : vector<64x128xf32>
    %101 = arith.addf %96, %100 : vector<64x128xf32>
    %c6_46 = arith.constant 6 : index
    %c0_47 = arith.constant 0 : index
    %102 = vector.load %arg10[%c6_46, %c0_47] : memref<70x128xf32, #tpu.memory_space<vmem>>, vector<64x128xf32>
    %103 = vector.extract_strided_slice %21 {offsets = [6, 0], sizes = [1, 128], strides = [1, 1]} : vector<7x128xf32> to vector<1x128xf32>
    %104 = vector.broadcast %103 : vector<1x128xf32> to vector<64x128xf32>
    %105 = arith.mulf %102, %104 : vector<64x128xf32>
    %106 = arith.addf %101, %105 : vector<64x128xf32>
    %107 = vector.broadcast %22 : vector<1x128xf32> to vector<64x128xf32>
    %108 = arith.addf %106, %107 : vector<64x128xf32>
    %c64 = arith.constant 64 : index
    %c0_48 = arith.constant 0 : index
    %109 = vector.load %arg8[%c64, %c0_48] : memref<256x128xf32, #tpu.memory_space<vmem>>, vector<64x128xf32>
    tpu.vector_store %arg8[%c64, %c0_48], %108 {strides = array<i32>} : memref<256x128xf32, #tpu.memory_space<vmem>>, vector<64x128xf32>,
    %cst_49 = arith.constant dense<0.000000e+00> : vector<128xf32>
    %110 = vector.multi_reduction <add>, %108, %cst_49 [0] : vector<64x128xf32> to vector<128xf32>
    %111 = vector.shape_cast %110 : vector<128xf32> to vector<1x128xf32>
    %112 = arith.addf %66, %111 : vector<1x128xf32>
    %113 = arith.mulf %108, %108 : vector<64x128xf32>
    %cst_50 = arith.constant dense<0.000000e+00> : vector<128xf32>
    %114 = vector.multi_reduction <add>, %113, %cst_50 [0] : vector<64x128xf32> to vector<128xf32>
    %115 = vector.shape_cast %114 : vector<128xf32> to vector<1x128xf32>
    %116 = arith.addf %70, %115 : vector<1x128xf32>
    %117 = vector.extract_strided_slice %20 {offsets = [128, 0], sizes = [64, 128], strides = [1, 1]} : vector<256x128xf32> to vector<64x128xf32>
    %c3_51 = arith.constant 3 : index
    %c0_52 = arith.constant 0 : index
    %118 = vector.load %arg10[%c3_51, %c0_52] : memref<70x128xf32, #tpu.memory_space<vmem>>, vector<64x128xf32>
    tpu.vector_store %arg10[%c3_51, %c0_52], %117 {strides = array<i32>} : memref<70x128xf32, #tpu.memory_space<vmem>>, vector<64x128xf32>,
    %c0_53 = arith.constant 0 : index
    %c0_54 = arith.constant 0 : index
    %119 = vector.load %arg10[%c0_53, %c0_54] : memref<70x128xf32, #tpu.memory_space<vmem>>, vector<64x128xf32>
    %120 = vector.extract_strided_slice %21 {offsets = [0, 0], sizes = [1, 128], strides = [1, 1]} : vector<7x128xf32> to vector<1x128xf32>
    %121 = vector.broadcast %120 : vector<1x128xf32> to vector<64x128xf32>
    %122 = arith.mulf %119, %121 : vector<64x128xf32>
    %c1_55 = arith.constant 1 : index
    %c0_56 = arith.constant 0 : index
    %123 = vector.load %arg10[%c1_55, %c0_56] : memref<70x128xf32, #tpu.memory_space<vmem>>, vector<64x128xf32>
    %124 = vector.extract_strided_slice %21 {offsets = [1, 0], sizes = [1, 128], strides = [1, 1]} : vector<7x128xf32> to vector<1x128xf32>
    %125 = vector.broadcast %124 : vector<1x128xf32> to vector<64x128xf32>
    %126 = arith.mulf %123, %125 : vector<64x128xf32>
    %127 = arith.addf %122, %126 : vector<64x128xf32>
    %c2_57 = arith.constant 2 : index
    %c0_58 = arith.constant 0 : index
    %128 = vector.load %arg10[%c2_57, %c0_58] : memref<70x128xf32, #tpu.memory_space<vmem>>, vector<64x128xf32>
    %129 = vector.extract_strided_slice %21 {offsets = [2, 0], sizes = [1, 128], strides = [1, 1]} : vector<7x128xf32> to vector<1x128xf32>
    %130 = vector.broadcast %129 : vector<1x128xf32> to vector<64x128xf32>
    %131 = arith.mulf %128, %130 : vector<64x128xf32>
    %132 = arith.addf %127, %131 : vector<64x128xf32>
    %c3_59 = arith.constant 3 : index
    %c0_60 = arith.constant 0 : index
    %133 = vector.load %arg10[%c3_59, %c0_60] : memref<70x128xf32, #tpu.memory_space<vmem>>, vector<64x128xf32>
    %134 = vector.extract_strided_slice %21 {offsets = [3, 0], sizes = [1, 128], strides = [1, 1]} : vector<7x128xf32> to vector<1x128xf32>
    %135 = vector.broadcast %134 : vector<1x128xf32> to vector<64x128xf32>
    %136 = arith.mulf %133, %135 : vector<64x128xf32>
    %137 = arith.addf %132, %136 : vector<64x128xf32>
    %c4_61 = arith.constant 4 : index
    %c0_62 = arith.constant 0 : index
    %138 = vector.load %arg10[%c4_61, %c0_62] : memref<70x128xf32, #tpu.memory_space<vmem>>, vector<64x128xf32>
    %139 = vector.extract_strided_slice %21 {offsets = [4, 0], sizes = [1, 128], strides = [1, 1]} : vector<7x128xf32> to vector<1x128xf32>
    %140 = vector.broadcast %139 : vector<1x128xf32> to vector<64x128xf32>
    %141 = arith.mulf %138, %140 : vector<64x128xf32>
    %142 = arith.addf %137, %141 : vector<64x128xf32>
    %c5_63 = arith.constant 5 : index
    %c0_64 = arith.constant 0 : index
    %143 = vector.load %arg10[%c5_63, %c0_64] : memref<70x128xf32, #tpu.memory_space<vmem>>, vector<64x128xf32>
    %144 = vector.extract_strided_slice %21 {offsets = [5, 0], sizes = [1, 128], strides = [1, 1]} : vector<7x128xf32> to vector<1x128xf32>
    %145 = vector.broadcast %144 : vector<1x128xf32> to vector<64x128xf32>
    %146 = arith.mulf %143, %145 : vector<64x128xf32>
    %147 = arith.addf %142, %146 : vector<64x128xf32>
    %c6_65 = arith.constant 6 : index
    %c0_66 = arith.constant 0 : index
    %148 = vector.load %arg10[%c6_65, %c0_66] : memref<70x128xf32, #tpu.memory_space<vmem>>, vector<64x128xf32>
    %149 = vector.extract_strided_slice %21 {offsets = [6, 0], sizes = [1, 128], strides = [1, 1]} : vector<7x128xf32> to vector<1x128xf32>
    %150 = vector.broadcast %149 : vector<1x128xf32> to vector<64x128xf32>
    %151 = arith.mulf %148, %150 : vector<64x128xf32>
    %152 = arith.addf %147, %151 : vector<64x128xf32>
    %153 = vector.broadcast %22 : vector<1x128xf32> to vector<64x128xf32>
    %154 = arith.addf %152, %153 : vector<64x128xf32>
    %c128 = arith.constant 128 : index
    %c0_67 = arith.constant 0 : index
    %155 = vector.load %arg8[%c128, %c0_67] : memref<256x128xf32, #tpu.memory_space<vmem>>, vector<64x128xf32>
    tpu.vector_store %arg8[%c128, %c0_67], %154 {strides = array<i32>} : memref<256x128xf32, #tpu.memory_space<vmem>>, vector<64x128xf32>,
    %cst_68 = arith.constant dense<0.000000e+00> : vector<128xf32>
    %156 = vector.multi_reduction <add>, %154, %cst_68 [0] : vector<64x128xf32> to vector<128xf32>
    %157 = vector.shape_cast %156 : vector<128xf32> to vector<1x128xf32>
    %158 = arith.addf %112, %157 : vector<1x128xf32>
    %159 = arith.mulf %154, %154 : vector<64x128xf32>
    %cst_69 = arith.constant dense<0.000000e+00> : vector<128xf32>
    %160 = vector.multi_reduction <add>, %159, %cst_69 [0] : vector<64x128xf32> to vector<128xf32>
    %161 = vector.shape_cast %160 : vector<128xf32> to vector<1x128xf32>
    %162 = arith.addf %116, %161 : vector<1x128xf32>
    %163 = vector.extract_strided_slice %20 {offsets = [192, 0], sizes = [64, 128], strides = [1, 1]} : vector<256x128xf32> to vector<64x128xf32>
    %c3_70 = arith.constant 3 : index
    %c0_71 = arith.constant 0 : index
    %164 = vector.load %arg10[%c3_70, %c0_71] : memref<70x128xf32, #tpu.memory_space<vmem>>, vector<64x128xf32>
    tpu.vector_store %arg10[%c3_70, %c0_71], %163 {strides = array<i32>} : memref<70x128xf32, #tpu.memory_space<vmem>>, vector<64x128xf32>,
    %c0_72 = arith.constant 0 : index
    %c0_73 = arith.constant 0 : index
    %165 = vector.load %arg10[%c0_72, %c0_73] : memref<70x128xf32, #tpu.memory_space<vmem>>, vector<64x128xf32>
    %166 = vector.extract_strided_slice %21 {offsets = [0, 0], sizes = [1, 128], strides = [1, 1]} : vector<7x128xf32> to vector<1x128xf32>
    %167 = vector.broadcast %166 : vector<1x128xf32> to vector<64x128xf32>
    %168 = arith.mulf %165, %167 : vector<64x128xf32>
    %c1_74 = arith.constant 1 : index
    %c0_75 = arith.constant 0 : index
    %169 = vector.load %arg10[%c1_74, %c0_75] : memref<70x128xf32, #tpu.memory_space<vmem>>, vector<64x128xf32>
    %170 = vector.extract_strided_slice %21 {offsets = [1, 0], sizes = [1, 128], strides = [1, 1]} : vector<7x128xf32> to vector<1x128xf32>
    %171 = vector.broadcast %170 : vector<1x128xf32> to vector<64x128xf32>
    %172 = arith.mulf %169, %171 : vector<64x128xf32>
    %173 = arith.addf %168, %172 : vector<64x128xf32>
    %c2_76 = arith.constant 2 : index
    %c0_77 = arith.constant 0 : index
    %174 = vector.load %arg10[%c2_76, %c0_77] : memref<70x128xf32, #tpu.memory_space<vmem>>, vector<64x128xf32>
    %175 = vector.extract_strided_slice %21 {offsets = [2, 0], sizes = [1, 128], strides = [1, 1]} : vector<7x128xf32> to vector<1x128xf32>
    %176 = vector.broadcast %175 : vector<1x128xf32> to vector<64x128xf32>
    %177 = arith.mulf %174, %176 : vector<64x128xf32>
    %178 = arith.addf %173, %177 : vector<64x128xf32>
    %c3_78 = arith.constant 3 : index
    %c0_79 = arith.constant 0 : index
    %179 = vector.load %arg10[%c3_78, %c0_79] : memref<70x128xf32, #tpu.memory_space<vmem>>, vector<64x128xf32>
    %180 = vector.extract_strided_slice %21 {offsets = [3, 0], sizes = [1, 128], strides = [1, 1]} : vector<7x128xf32> to vector<1x128xf32>
    %181 = vector.broadcast %180 : vector<1x128xf32> to vector<64x128xf32>
    %182 = arith.mulf %179, %181 : vector<64x128xf32>
    %183 = arith.addf %178, %182 : vector<64x128xf32>
    %c4_80 = arith.constant 4 : index
    %c0_81 = arith.constant 0 : index
    %184 = vector.load %arg10[%c4_80, %c0_81] : memref<70x128xf32, #tpu.memory_space<vmem>>, vector<64x128xf32>
    %185 = vector.extract_strided_slice %21 {offsets = [4, 0], sizes = [1, 128], strides = [1, 1]} : vector<7x128xf32> to vector<1x128xf32>
    %186 = vector.broadcast %185 : vector<1x128xf32> to vector<64x128xf32>
    %187 = arith.mulf %184, %186 : vector<64x128xf32>
    %188 = arith.addf %183, %187 : vector<64x128xf32>
    %c5_82 = arith.constant 5 : index
    %c0_83 = arith.constant 0 : index
    %189 = vector.load %arg10[%c5_82, %c0_83] : memref<70x128xf32, #tpu.memory_space<vmem>>, vector<64x128xf32>
    %190 = vector.extract_strided_slice %21 {offsets = [5, 0], sizes = [1, 128], strides = [1, 1]} : vector<7x128xf32> to vector<1x128xf32>
    %191 = vector.broadcast %190 : vector<1x128xf32> to vector<64x128xf32>
    %192 = arith.mulf %189, %191 : vector<64x128xf32>
    %193 = arith.addf %188, %192 : vector<64x128xf32>
    %c6_84 = arith.constant 6 : index
    %c0_85 = arith.constant 0 : index
    %194 = vector.load %arg10[%c6_84, %c0_85] : memref<70x128xf32, #tpu.memory_space<vmem>>, vector<64x128xf32>
    %195 = vector.extract_strided_slice %21 {offsets = [6, 0], sizes = [1, 128], strides = [1, 1]} : vector<7x128xf32> to vector<1x128xf32>
    %196 = vector.broadcast %195 : vector<1x128xf32> to vector<64x128xf32>
    %197 = arith.mulf %194, %196 : vector<64x128xf32>
    %198 = arith.addf %193, %197 : vector<64x128xf32>
    %199 = vector.broadcast %22 : vector<1x128xf32> to vector<64x128xf32>
    %200 = arith.addf %198, %199 : vector<64x128xf32>
    %c192 = arith.constant 192 : index
    %c0_86 = arith.constant 0 : index
    %201 = vector.load %arg8[%c192, %c0_86] : memref<256x128xf32, #tpu.memory_space<vmem>>, vector<64x128xf32>
    tpu.vector_store %arg8[%c192, %c0_86], %200 {strides = array<i32>} : memref<256x128xf32, #tpu.memory_space<vmem>>, vector<64x128xf32>,
    %cst_87 = arith.constant dense<0.000000e+00> : vector<128xf32>
    %202 = vector.multi_reduction <add>, %200, %cst_87 [0] : vector<64x128xf32> to vector<128xf32>
    %203 = vector.shape_cast %202 : vector<128xf32> to vector<1x128xf32>
    %204 = arith.addf %158, %203 : vector<1x128xf32>
    %205 = arith.mulf %200, %200 : vector<64x128xf32>
    %cst_88 = arith.constant dense<0.000000e+00> : vector<128xf32>
    %206 = vector.multi_reduction <add>, %205, %cst_88 [0] : vector<64x128xf32> to vector<128xf32>
    %207 = vector.shape_cast %206 : vector<128xf32> to vector<1x128xf32>
    %208 = arith.addf %162, %207 : vector<1x128xf32>
    %c0_89 = arith.constant 0 : index
    %c0_90 = arith.constant 0 : index
    %209 = vector.load %arg9[%c0_89, %c0_90] : memref<2x128xf32, #tpu.memory_space<vmem>>, vector<1x128xf32>
    %210 = arith.addf %209, %204 : vector<1x128xf32>
    %c0_91 = arith.constant 0 : index
    %c0_92 = arith.constant 0 : index
    %211 = vector.load %arg9[%c0_91, %c0_92] : memref<2x128xf32, #tpu.memory_space<vmem>>, vector<1x128xf32>
    tpu.vector_store %arg9[%c0_91, %c0_92], %210 {strides = array<i32>} : memref<2x128xf32, #tpu.memory_space<vmem>>, vector<1x128xf32>,
    %c1_93 = arith.constant 1 : index
    %c0_94 = arith.constant 0 : index
    %212 = vector.load %arg9[%c1_93, %c0_94] : memref<2x128xf32, #tpu.memory_space<vmem>>, vector<1x128xf32>
    %213 = arith.addf %212, %208 : vector<1x128xf32>
    %c1_95 = arith.constant 1 : index
    %c0_96 = arith.constant 0 : index
    %214 = vector.load %arg9[%c1_95, %c0_96] : memref<2x128xf32, #tpu.memory_space<vmem>>, vector<1x128xf32>
    tpu.vector_store %arg9[%c1_95, %c0_96], %213 {strides = array<i32>} : memref<2x128xf32, #tpu.memory_space<vmem>>, vector<1x128xf32>,
    return
  }
  func.func @transform_0(%arg0: i32) -> (i32, i32) {
    %c0_i32 = arith.constant 0 : i32
    %c0_i32_0 = arith.constant 0 : i32
    return %arg0, %c0_i32 : i32, i32
  }
  func.func @transform_1(%arg0: i32) -> (i32, i32) {
    %c0_i32 = arith.constant 0 : i32
    %c0_i32_0 = arith.constant 0 : i32
    %c0_i32_1 = arith.constant 0 : i32
    return %c0_i32, %c0_i32_0 : i32, i32
  }
  func.func @transform_2(%arg0: i32) -> (i32, i32) {
    %c0_i32 = arith.constant 0 : i32
    %c0_i32_0 = arith.constant 0 : i32
    %c0_i32_1 = arith.constant 0 : i32
    return %c0_i32, %c0_i32_0 : i32, i32
  }
  func.func @transform_3(%arg0: i32) -> (i32, i32) {
    %c0_i32 = arith.constant 0 : i32
    %c0_i32_0 = arith.constant 0 : i32
    %c0_i32_1 = arith.constant 0 : i32
    return %c0_i32, %c0_i32_0 : i32, i32
  }
  func.func @transform_4(%arg0: i32) -> (i32, i32) {
    %c0_i32 = arith.constant 0 : i32
    %c0_i32_0 = arith.constant 0 : i32
    %c0_i32_1 = arith.constant 0 : i32
    return %c0_i32, %c0_i32_0 : i32, i32
  }
  func.func @transform_5(%arg0: i32) -> (i32, i32) {
    %c0_i32 = arith.constant 0 : i32
    %c0_i32_0 = arith.constant 0 : i32
    %c0_i32_1 = arith.constant 0 : i32
    return %c0_i32, %c0_i32_0 : i32, i32
  }
  func.func @transform_6(%arg0: i32) -> (i32, i32) {
    %c0_i32 = arith.constant 0 : i32
    %c0_i32_0 = arith.constant 0 : i32
    %c0_i32_1 = arith.constant 0 : i32
    return %c0_i32, %c0_i32_0 : i32, i32
  }
  func.func @transform_7(%arg0: i32) -> (i32, i32) {
    %c0_i32 = arith.constant 0 : i32
    %c0_i32_0 = arith.constant 0 : i32
    return %arg0, %c0_i32 : i32, i32
  }
  func.func @transform_8(%arg0: i32) -> (i32, i32) {
    %c0_i32 = arith.constant 0 : i32
    %c0_i32_0 = arith.constant 0 : i32
    %c0_i32_1 = arith.constant 0 : i32
    return %c0_i32, %c0_i32_0 : i32, i32
  }
}

</mosaic_0001>

<llo_original>
// kernel: tpu_custom_call.1
$region0: #{tpu_custom_call.1}
  #allocation0 [shape = 'u32[]', space=smem, size = 0x4, offset = 0x4, fixed_abs, tag = 'smem constant byte address 0x4 - core index']
  #allocation1 [shape = 'u32[144,128]{1,0:T(1,128)}', space=vmem, size = 0x12000, scoped, tag = 'internal scratch']
  #allocation2 [shape = 'f32[70,128]{1,0:T(8,128)}', space=vmem, size = 0x9000, scoped, tag = 'scratch operand']
  %s0 = inlined_call_operand.hbm [shape: f32[512,128], index: 0, kind: input, shape index: {}]
  %s1 = inlined_call_operand.hbm [shape: bf16[128,128], index: 1, kind: input, shape index: {}]
  %s2 = inlined_call_operand.vmem [shape: f32[1,128], index: 2, kind: input, shape index: {}]
  %s3 = inlined_call_operand.hbm [shape: bf16[128,128], index: 3, kind: input, shape index: {}]
  %s4 = inlined_call_operand.hbm [shape: f32[1,128], index: 4, kind: input, shape index: {}]
  %s5 = inlined_call_operand.vmem [shape: f32[7,128], index: 5, kind: input, shape index: {}]
  %s6 = inlined_call_operand.vmem [shape: f32[1,128], index: 6, kind: input, shape index: {}]
  %s7 = inlined_call_operand.hbm [shape: f32[512,128], index: 7, kind: output, shape index: {0}]
  %s8 = inlined_call_operand.hbm [shape: f32[2,128], index: 8, kind: output, shape index: {1}]
  %9 = xla_tuple %s7, %s8
  %s10 = sld [smem:[#allocation0]]
  $region89: #{tpu_custom_call.1} parent=0
    _
  %s12 = ssub.s32 1, %s10
  %s13 = scalar_select 0, %s12, %s10
  $region1: #{tpu_custom_call.1} parent=0
    #allocation3 [shape = 'u8[262144]{0}', space=vmem, size = 0x40000, scoped, tag = 'input window, operand 0']
    #allocation4 [shape = 's32[2]{0}', space=sflag, size = 0x8, scoped, tag = 'scoped memory for tpu_custom_call.1']
    #allocation5 [shape = 's32[2]{0}', space=sflag, size = 0x8, scoped, tag = 'scoped memory for tpu_custom_call.1']
    #allocation6 [shape = 'u8[32768]{0}', space=vmem, size = 0x8000, scoped, tag = 'input window, operand 1, single buffered']
    #allocation7 [shape = 's32[1]{0}', space=sflag, size = 0x4, scoped, tag = 'scoped memory for tpu_custom_call.1']
    #allocation8 [shape = 'u8[32768]{0}', space=vmem, size = 0x8000, scoped, tag = 'input window, operand 3, single buffered']
    #allocation9 [shape = 'u8[512]{0}', space=vmem, size = 0x400, scoped, tag = 'input window, operand 4, single buffered']
    #allocation10 [shape = 's32[1]{0}', space=sflag, size = 0x4, scoped, tag = 'scoped memory for tpu_custom_call.1']
    #allocation11 [shape = 'u8[262144]{0}', space=vmem, size = 0x40000, scoped, tag = 'output window, operand 0']
    #allocation12 [shape = 'u8[1024]{0}', space=vmem, size = 0x400, scoped, tag = 'output window, operand 1, single buffered']
    #allocation13 [shape = 's32[1]{0}', space=sflag, size = 0x4, scoped, tag = 'scoped memory for tpu_custom_call.1']
    %14 = vsyncpa [#allocation4], 0
    %s15 = scalar_lea.sflag [#allocation4], 1
    %16 = vsyncpa %s15, 0
    %17 = vsyncpa [#allocation7], 0
    %18 = vsyncpa [#allocation10], 0
    %19 = vsyncpa [#allocation5], 0
    %s20 = scalar_lea.sflag [#allocation5], 1
    %21 = vsyncpa %s20, 0
    %22 = vsyncpa [#allocation13], 0
    loop: start=0, step=1, limit=4
    $region2: #{tpu_custom_call.1} parent=1 // loop_pre_header
      _
    $region3: #{tpu_custom_call.1} parent=1 // loop_header
      %s24 = sphi 0, %s28
      %p25 = scmp.ge.s32.totalorder %s24, 4
      %s34 = sphi 0, %s36
      %s37 = sphi 0, %s34
      %s38 = sphi 0, %s37
      %s54 = sphi 0, %s38
      %s58 = sphi 0, %s58
      %s60 = sphi 0, %s58
      %s61 = sphi 0, %s60
      %s75 = sphi 0, %s61
      %s79 = sphi 0, %s79
      %s81 = sphi 0, %s79
      %s82 = sphi 0, %s81
      %s96 = sphi 0, %s82
      %s100 = sphi 0, %s100
      %s102 = sphi 0, %s100
      %s103 = sphi 0, %s102
      %s117 = sphi 0, %s103
      %s121 = sphi 0, %s121
      %s123 = sphi 0, %s121
      %s124 = sphi 0, %s123
      %s138 = sphi 0, %s124
      %s142 = sphi 0, %s142
      %s144 = sphi 0, %s142
      %s145 = sphi 0, %s144
      %s159 = sphi 0, %s145
      %s163 = sphi 0, %s163
      %s165 = sphi 0, %s163
      %s166 = sphi 0, %s165
      %s180 = sphi 0, %s166
      %s186 = sphi 0, %s188
      %s189 = sphi 0, %s186
      %s190 = sphi 0, %s189
      %s206 = sphi 0, %s190
      %s210 = sphi 0, %s210
      %s212 = sphi 0, %s210
      %s213 = sphi 0, %s212
      %s227 = sphi 0, %s213
    $region4: #{tpu_custom_call.1} parent=1 // loop_header_branch
      %27 = sbr.rel (%p25) target = $region8
    $region5: #{tpu_custom_call.1} parent=1 // loop_body
      %s29 = ssub.s32 %s24, 1
      %s30 = ssub.s32 %s24, 2
      %s31 = sadd.s32 %s24, 1
      %s32 = ssub.s32 %s24, %s31
      %p33 = scmp.eq.s32.totalorder %s32, 0
      %s35 = sadd.s32 %s34, 1
      %s36 = scalar_select %p33, %s34, %s35
      %p39 = pneg %p33
      %p40 = scmp.eq.s32.totalorder %s24, 1
      %p41 = por %p39, %p40
      %p42 = scmp.ne.s32.totalorder %s34, %s37
      %p43 = scmp.eq.s32.totalorder %s24, 0
      %p44 = por %p42, %p43
      %p45 = scmp.ne.s32.totalorder %s34, %s37
      %p46 = scmp.eq.s32.totalorder %s29, 1
      %p47 = por %p45, %p46
      %p48 = scmp.ne.s32.totalorder %s37, %s38
      %p49 = scmp.eq.s32.totalorder %s29, 0
      %p50 = por %p48, %p49
      %p51 = scmp.ne.s32.totalorder %s37, %s38
      %p52 = scmp.eq.s32.totalorder %s30, 1
      %p53 = por %p51, %p52
      %p55 = scmp.ne.s32.totalorder %s38, %s54
      %p56 = scmp.eq.s32.totalorder %s30, 0
      %p57 = por %p55, %p56
      %s59 = sadd.s32 %s58, 1
      %p62 = scmp.eq.s32.totalorder %s24, 1
      %p63 = scmp.ne.s32.totalorder %s58, %s60
      %p64 = scmp.eq.s32.totalorder %s24, 0
      %p65 = por %p63, %p64
      %p66 = scmp.ne.s32.totalorder %s58, %s60
      %p67 = scmp.eq.s32.totalorder %s29, 1
      %p68 = por %p66, %p67
      %p69 = scmp.ne.s32.totalorder %s60, %s61
      %p70 = scmp.eq.s32.totalorder %s29, 0
      %p71 = por %p69, %p70
      %p72 = scmp.ne.s32.totalorder %s60, %s61
      %p73 = scmp.eq.s32.totalorder %s30, 1
      %p74 = por %p72, %p73
      %p76 = scmp.ne.s32.totalorder %s61, %s75
      %p77 = scmp.eq.s32.totalorder %s30, 0
      %p78 = por %p76, %p77
      %s80 = sadd.s32 %s79, 1
      %p83 = scmp.eq.s32.totalorder %s24, 1
      %p84 = scmp.ne.s32.totalorder %s79, %s81
      %p85 = scmp.eq.s32.totalorder %s24, 0
      %p86 = por %p84, %p85
      %p87 = scmp.ne.s32.totalorder %s79, %s81
      %p88 = scmp.eq.s32.totalorder %s29, 1
      %p89 = por %p87, %p88
      %p90 = scmp.ne.s32.totalorder %s81, %s82
      %p91 = scmp.eq.s32.totalorder %s29, 0
      %p92 = por %p90, %p91
      %p93 = scmp.ne.s32.totalorder %s81, %s82
      %p94 = scmp.eq.s32.totalorder %s30, 1
      %p95 = por %p93, %p94
      %p97 = scmp.ne.s32.totalorder %s82, %s96
      %p98 = scmp.eq.s32.totalorder %s30, 0
      %p99 = por %p97, %p98
      %s101 = sadd.s32 %s100, 1
      %p104 = scmp.eq.s32.totalorder %s24, 1
      %p105 = scmp.ne.s32.totalorder %s100, %s102
      %p106 = scmp.eq.s32.totalorder %s24, 0
      %p107 = por %p105, %p106
      %p108 = scmp.ne.s32.totalorder %s100, %s102
      %p109 = scmp.eq.s32.totalorder %s29, 1
      %p110 = por %p108, %p109
      %p111 = scmp.ne.s32.totalorder %s102, %s103
      %p112 = scmp.eq.s32.totalorder %s29, 0
      %p113 = por %p111, %p112
      %p114 = scmp.ne.s32.totalorder %s102, %s103
      %p115 = scmp.eq.s32.totalorder %s30, 1
      %p116 = por %p114, %p115
      %p118 = scmp.ne.s32.totalorder %s103, %s117
      %p119 = scmp.eq.s32.totalorder %s30, 0
      %p120 = por %p118, %p119
      %s122 = sadd.s32 %s121, 1
      %p125 = scmp.eq.s32.totalorder %s24, 1
      %p126 = scmp.ne.s32.totalorder %s121, %s123
      %p127 = scmp.eq.s32.totalorder %s24, 0
      %p128 = por %p126, %p127
      %p129 = scmp.ne.s32.totalorder %s121, %s123
      %p130 = scmp.eq.s32.totalorder %s29, 1
      %p131 = por %p129, %p130
      %p132 = scmp.ne.s32.totalorder %s123, %s124
      %p133 = scmp.eq.s32.totalorder %s29, 0
      %p134 = por %p132, %p133
      %p135 = scmp.ne.s32.totalorder %s123, %s124
      %p136 = scmp.eq.s32.totalorder %s30, 1
      %p137 = por %p135, %p136
      %p139 = scmp.ne.s32.totalorder %s124, %s138
      %p140 = scmp.eq.s32.totalorder %s30, 0
      %p141 = por %p139, %p140
      %s143 = sadd.s32 %s142, 1
      %p146 = scmp.eq.s32.totalorder %s24, 1
      %p147 = scmp.ne.s32.totalorder %s142, %s144
      %p148 = scmp.eq.s32.totalorder %s24, 0
      %p149 = por %p147, %p148
      %p150 = scmp.ne.s32.totalorder %s142, %s144
      %p151 = scmp.eq.s32.totalorder %s29, 1
      %p152 = por %p150, %p151
      %p153 = scmp.ne.s32.totalorder %s144, %s145
      %p154 = scmp.eq.s32.totalorder %s29, 0
      %p155 = por %p153, %p154
      %p156 = scmp.ne.s32.totalorder %s144, %s145
      %p157 = scmp.eq.s32.totalorder %s30, 1
      %p158 = por %p156, %p157
      %p160 = scmp.ne.s32.totalorder %s145, %s159
      %p161 = scmp.eq.s32.totalorder %s30, 0
      %p162 = por %p160, %p161
      %s164 = sadd.s32 %s163, 1
      %p167 = scmp.eq.s32.totalorder %s24, 1
      %p168 = scmp.ne.s32.totalorder %s163, %s165
      %p169 = scmp.eq.s32.totalorder %s24, 0
      %p170 = por %p168, %p169
      %p171 = scmp.ne.s32.totalorder %s163, %s165
      %p172 = scmp.eq.s32.totalorder %s29, 1
      %p173 = por %p171, %p172
      %p174 = scmp.ne.s32.totalorder %s165, %s166
      %p175 = scmp.eq.s32.totalorder %s29, 0
      %p176 = por %p174, %p175
      %p177 = scmp.ne.s32.totalorder %s165, %s166
      %p178 = scmp.eq.s32.totalorder %s30, 1
      %p179 = por %p177, %p178
      %p181 = scmp.ne.s32.totalorder %s166, %s180
      %p182 = scmp.eq.s32.totalorder %s30, 0
      %p183 = por %p181, %p182
      %s184 = ssub.s32 %s24, %s31
      %p185 = scmp.eq.s32.totalorder %s184, 0
      %s187 = sadd.s32 %s186, 1
      %s188 = scalar_select %p185, %s186, %s187
      %p191 = pneg %p185
      %p192 = scmp.eq.s32.totalorder %s24, 1
      %p193 = por %p191, %p192
      %p194 = scmp.ne.s32.totalorder %s186, %s189
      %p195 = scmp.eq.s32.totalorder %s24, 0
      %p196 = por %p194, %p195
      %p197 = scmp.ne.s32.totalorder %s186, %s189
      %p198 = scmp.eq.s32.totalorder %s29, 1
      %p199 = por %p197, %p198
      %p200 = scmp.ne.s32.totalorder %s189, %s190
      %p201 = scmp.eq.s32.totalorder %s29, 0
      %p202 = por %p200, %p201
      %p203 = scmp.ne.s32.totalorder %s189, %s190
      %p204 = scmp.eq.s32.totalorder %s30, 1
      %p205 = por %p203, %p204
      %p207 = scmp.ne.s32.totalorder %s190, %s206
      %p208 = scmp.eq.s32.totalorder %s30, 0
      %p209 = por %p207, %p208
      %s211 = sadd.s32 %s210, 1
      %p214 = scmp.eq.s32.totalorder %s24, 1
      %p215 = scmp.ne.s32.totalorder %s210, %s212
      %p216 = scmp.eq.s32.totalorder %s24, 0
      %p217 = por %p215, %p216
      %p218 = scmp.ne.s32.totalorder %s210, %s212
      %p219 = scmp.eq.s32.totalorder %s29, 1
      %p220 = por %p218, %p219
      %p221 = scmp.ne.s32.totalorder %s212, %s213
      %p222 = scmp.eq.s32.totalorder %s29, 0
      %p223 = por %p221, %p222
      %p224 = scmp.ne.s32.totalorder %s212, %s213
      %p225 = scmp.eq.s32.totalorder %s30, 1
      %p226 = por %p224, %p225
      %p228 = scmp.ne.s32.totalorder %s213, %s227
      %p229 = scmp.eq.s32.totalorder %s30, 0
      %p230 = por %p228, %p229
      %p231 = scmp.le.s32.totalorder 1, %s24
      %p232 = scmp.lt.s32.totalorder %s24, 3
      %p233 = pnand %p231, %p232
      %p234 = pneg %p233
      // Predicated region
      $region9: #{tpu_custom_call.1} parent=5 // pred_check
        _
      $region10: #{tpu_custom_call.1} parent=5 // pred_check_branch
        %236 = sbr.rel (%p233) target = $region12
      $region11: #{tpu_custom_call.1} parent=5 // pred_region
        %s237 = ssub.s32 %s24, 1
        // Predicated region
        $region13: #{tpu_custom_call.1} parent=11 // pred_check
          %p238 = pneg %p71
        $region14: #{tpu_custom_call.1} parent=11 // pred_check_branch
          %240 = sbr.rel (%p238) target = $region16
        $region15: #{tpu_custom_call.1} parent=11 // pred_region
          %s242 = ssub.s32 1024, 1024
          %243 = vsyncadd [#allocation7], %s242
          %s244 = sshll.u32 [#allocation6], 4
          %s245 = int_to_ptr.vmem [resolvable:$true] %s244
          %250 = dma.hbm_to_vmem [thread:$0]  %s1, 1024, %s245, [#allocation7], 64, 64, 4
        $region16: #{tpu_custom_call.1} parent=11 // pred_fallthru
          _
        // Predicated region
        $region17: #{tpu_custom_call.1} parent=11 // pred_check
          %p251 = pneg %p92
        $region18: #{tpu_custom_call.1} parent=11 // pred_check_branch
          %253 = sbr.rel (%p251) target = $region20
        $region19: #{tpu_custom_call.1} parent=11 // pred_region
          _
        $region20: #{tpu_custom_call.1} parent=11 // pred_fallthru
          _
        // Predicated region
        $region21: #{tpu_custom_call.1} parent=11 // pred_check
          %p254 = pneg %p113
        $region22: #{tpu_custom_call.1} parent=11 // pred_check_branch
          %256 = sbr.rel (%p254) target = $region24
        $region23: #{tpu_custom_call.1} parent=11 // pred_region
          %s258 = ssub.s32 1024, 1024
          %259 = vsyncadd [#allocation7], %s258
          %s260 = sshll.u32 [#allocation8], 4
          %s261 = int_to_ptr.vmem [resolvable:$true] %s260
          %266 = dma.hbm_to_vmem [thread:$0]  %s3, 1024, %s261, [#allocation7], 64, 64, 4
        $region24: #{tpu_custom_call.1} parent=11 // pred_fallthru
          _
        // Predicated region
        $region25: #{tpu_custom_call.1} parent=11 // pred_check
          %p267 = pneg %p134
        $region26: #{tpu_custom_call.1} parent=11 // pred_check_branch
          %269 = sbr.rel (%p267) target = $region28
        $region27: #{tpu_custom_call.1} parent=11 // pred_region
          %s271 = ssub.s32 16, 16
          %272 = vsyncadd [#allocation10], %s271
          %s274 = sshll.u32 [#allocation9], 4
          %s275 = int_to_ptr.vmem [resolvable:$true] %s274
          %277 = dma.hbm_to_vmem [thread:$0]  %s4, 16, %s275, [#allocation10]
        $region28: #{tpu_custom_call.1} parent=11 // pred_fallthru
          _
        // Predicated region
        $region29: #{tpu_custom_call.1} parent=11 // pred_check
          %p278 = pneg %p155
        $region30: #{tpu_custom_call.1} parent=11 // pred_check_branch
          %280 = sbr.rel (%p278) target = $region32
        $region31: #{tpu_custom_call.1} parent=11 // pred_region
          _
        $region32: #{tpu_custom_call.1} parent=11 // pred_fallthru
          _
        // Predicated region
        $region33: #{tpu_custom_call.1} parent=11 // pred_check
          %p281 = pneg %p176
        $region34: #{tpu_custom_call.1} parent=11 // pred_check_branch
          %283 = sbr.rel (%p281) target = $region36
        $region35: #{tpu_custom_call.1} parent=11 // pred_region
          _
        $region36: #{tpu_custom_call.1} parent=11 // pred_fallthru
          _
      $region12: #{tpu_custom_call.1} parent=5 // pred_fallthru
        _
      %p284 = scmp.lt.s32.totalorder %s24, 2
      // Predicated region
      $region37: #{tpu_custom_call.1} parent=5 // pred_check
        %p285 = pneg %p284
      $region38: #{tpu_custom_call.1} parent=5 // pred_check_branch
        %287 = sbr.rel (%p285) target = $region40
      $region39: #{tpu_custom_call.1} parent=5 // pred_region
        // Predicated region
        $region41: #{tpu_custom_call.1} parent=39 // pred_check
          %p288 = pneg %p44
        $region42: #{tpu_custom_call.1} parent=39 // pred_check_branch
          %290 = sbr.rel (%p288) target = $region44
        $region43: #{tpu_custom_call.1} parent=39 // pred_region
          %s291 = sand.u32 %s34, 1
          %s292 = scalar_lea.sflag [#allocation4], %s291
          %s293 = sand.u32 %s34, 1
          %s294 = smul.addr %s293, 256
          %s295 = scalar_lea.vmem [#allocation3], %s294
          %s296 = smul.u32 32, %s24
          %s298 = ssub.s32 4096, 4096
          %299 = vsyncadd %s292, %s298
          %s300 = smul.addr %s296, 128
          %s301 = scalar_lea.hbm %s0, %s300
          %s302 = sshll.u32 %s295, 4
          %s303 = int_to_ptr.vmem [resolvable:$true] %s302
          %308 = dma.hbm_to_vmem [thread:$0]  %s301, 4096, %s303, %s292, 128, 128, 8
        $region44: #{tpu_custom_call.1} parent=39 // pred_fallthru
          _
      $region40: #{tpu_custom_call.1} parent=5 // pred_fallthru
        _
      %p309 = scmp.le.s32.totalorder 1, %s24
      %p310 = scmp.lt.s32.totalorder %s24, 3
      %p311 = pnand %p309, %p310
      %p312 = pneg %p311
      // Predicated region
      $region45: #{tpu_custom_call.1} parent=5 // pred_check
        _
      $region46: #{tpu_custom_call.1} parent=5 // pred_check_branch
        %314 = sbr.rel (%p311) target = $region48
      $region47: #{tpu_custom_call.1} parent=5 // pred_region
        %s315 = ssub.s32 %s24, 1
        %s316 = sand.u32 %s37, 1
        %s317 = scalar_lea.sflag [#allocation4], %s316
        %s318 = sand.u32 %s37, 1
        %s319 = smul.addr %s318, 256
        %s320 = scalar_lea.vmem [#allocation3], %s319
        // Predicated region
        $region49: #{tpu_custom_call.1} parent=47 // pred_check
          %p321 = pneg %p50
        $region50: #{tpu_custom_call.1} parent=47 // pred_check_branch
          %323 = sbr.rel (%p321) target = $region52
        $region51: #{tpu_custom_call.1} parent=47 // pred_region
          %324 = dma.done %s317, 4096
        $region52: #{tpu_custom_call.1} parent=47 // pred_fallthru
          _
        // Predicated region
        $region53: #{tpu_custom_call.1} parent=47 // pred_check
          %p325 = pneg %p71
        $region54: #{tpu_custom_call.1} parent=47 // pred_check_branch
          %327 = sbr.rel (%p325) target = $region56
        $region55: #{tpu_custom_call.1} parent=47 // pred_region
          %328 = dma.done [#allocation7], 1024
        $region56: #{tpu_custom_call.1} parent=47 // pred_fallthru
          _
        // Predicated region
        $region57: #{tpu_custom_call.1} parent=47 // pred_check
          %p329 = pneg %p113
        $region58: #{tpu_custom_call.1} parent=47 // pred_check_branch
          %331 = sbr.rel (%p329) target = $region60
        $region59: #{tpu_custom_call.1} parent=47 // pred_region
          %332 = dma.done [#allocation7], 1024
        $region60: #{tpu_custom_call.1} parent=47 // pred_fallthru
          _
        // Predicated region
        $region61: #{tpu_custom_call.1} parent=47 // pred_check
          %p333 = pneg %p134
        $region62: #{tpu_custom_call.1} parent=47 // pred_check_branch
          %335 = sbr.rel (%p333) target = $region64
        $region63: #{tpu_custom_call.1} parent=47 // pred_region
          %336 = dma.done [#allocation10], 16
        $region64: #{tpu_custom_call.1} parent=47 // pred_fallthru
          _
        %s337 = sand.u32 %s37, 1
        %s338 = scalar_lea.sflag [#allocation4], %s337
        %s339 = sand.u32 %s37, 1
        %s340 = smul.addr %s339, 256
        %s341 = scalar_lea.vmem [#allocation3], %s340
        %p342 = pneg %p50
        %p343 = pneg %p47
        %p344 = pneg %p71
        %p345 = pneg %p68
        %p346 = pneg %p92
        %p347 = pneg %p89
        %p348 = pneg %p113
        %p349 = pneg %p110
        %p350 = pneg %p134
        %p351 = pneg %p131
        %p352 = pneg %p155
        %p353 = pneg %p152
        %p354 = pneg %p176
        %p355 = pneg %p173
        %p356 = pneg %p202
        %p357 = pneg %p199
        %s358 = sand.u32 %s189, 1
        %s359 = scalar_lea.sflag [#allocation5], %s358
        %s360 = sand.u32 %s189, 1
        %s361 = smul.addr %s360, 256
        %s362 = scalar_lea.vmem [#allocation11], %s361
        %p363 = pneg %p223
        %p364 = pneg %p220
        %s365 = smul.u32 32, %s29
        %s366 = smul.u32 32, %s29
        %p368 = scmp.eq.s32.totalorder %s29, 0
        // Predicated region
        $region65: #{tpu_custom_call.1} parent=47 // pred_check
          %p369 = pneg %p368
        $region66: #{tpu_custom_call.1} parent=47 // pred_check_branch
          %371 = sbr.rel (%p369) target = $region68
        $region67: #{tpu_custom_call.1} parent=47 // pred_region
          %372 = vst [vmem:[#allocation12] sm:$0x3] 0.0
          %373 = vst [vmem:[#allocation2] sm:$0xff] 0.0
          %374 = vst [vmem:[#allocation2 + $0x8] sm:$0xff] 0.0
          %375 = vst [vmem:[#allocation2 + $0x10] sm:$0xff] 0.0
          %376 = vst [vmem:[#allocation2 + $0x18] sm:$0xff] 0.0
          %377 = vst [vmem:[#allocation2 + $0x20] sm:$0xff] 0.0
          %378 = vst [vmem:[#allocation2 + $0x28] sm:$0xff] 0.0
          %379 = vst [vmem:[#allocation2 + $0x30] sm:$0xff] 0.0
          %380 = vst [vmem:[#allocation2 + $0x38] sm:$0xff] 0.0
          %381 = vst [vmem:[#allocation2 + $0x40] sm:$0x3f] 0.0
        $region68: #{tpu_custom_call.1} parent=47 // pred_fallthru
          _
        %v382 = vld [vmem:[%s320] sm:$0xff]
        %v383 = vld [vmem:[%s320 + $0x8] sm:$0xff]
        %v384 = vld [vmem:[%s320 + $0x10] sm:$0xff]
        %v385 = vld [vmem:[%s320 + $0x18] sm:$0xff]
        %v386 = vld [vmem:[%s320 + $0x20] sm:$0xff]
        %v387 = vld [vmem:[%s320 + $0x28] sm:$0xff]
        %v388 = vld [vmem:[%s320 + $0x30] sm:$0xff]
        %v389 = vld [vmem:[%s320 + $0x38] sm:$0xff]
        %v390 = vld [vmem:[%s320 + $0x40] sm:$0xff]
        %v391 = vld [vmem:[%s320 + $0x48] sm:$0xff]
        %v392 = vld [vmem:[%s320 + $0x50] sm:$0xff]
        %v393 = vld [vmem:[%s320 + $0x58] sm:$0xff]
        %v394 = vld [vmem:[%s320 + $0x60] sm:$0xff]
        %v395 = vld [vmem:[%s320 + $0x68] sm:$0xff]
        %v396 = vld [vmem:[%s320 + $0x70] sm:$0xff]
        %v397 = vld [vmem:[%s320 + $0x78] sm:$0xff]
        %v398 = vld [vmem:[%s320 + $0x80] sm:$0xff]
        %v399 = vld [vmem:[%s320 + $0x88] sm:$0xff]
        %v400 = vld [vmem:[%s320 + $0x90] sm:$0xff]
        %v401 = vld [vmem:[%s320 + $0x98] sm:$0xff]
        %v402 = vld [vmem:[%s320 + $0xa0] sm:$0xff]
        %v403 = vld [vmem:[%s320 + $0xa8] sm:$0xff]
        %v404 = vld [vmem:[%s320 + $0xb0] sm:$0xff]
        %v405 = vld [vmem:[%s320 + $0xb8] sm:$0xff]
        %v406 = vld [vmem:[%s320 + $0xc0] sm:$0xff]
        %v407 = vld [vmem:[%s320 + $0xc8] sm:$0xff]
        %v408 = vld [vmem:[%s320 + $0xd0] sm:$0xff]
        %v409 = vld [vmem:[%s320 + $0xd8] sm:$0xff]
        %v410 = vld [vmem:[%s320 + $0xe0] sm:$0xff]
        %v411 = vld [vmem:[%s320 + $0xe8] sm:$0xff]
        %v412 = vld [vmem:[%s320 + $0xf0] sm:$0xff]
        %v413 = vld [vmem:[%s320 + $0xf8] sm:$0xff]
        %v414 = vpack.c.bf16 %v383, %v382
        %v415 = vpack.c.bf16 %v385, %v384
        %v416 = vpack.c.bf16 %v387, %v386
        %v417 = vpack.c.bf16 %v389, %v388
        %v418 = vpack.c.bf16 %v391, %v390
        %v419 = vpack.c.bf16 %v393, %v392
        %v420 = vpack.c.bf16 %v395, %v394
        %v421 = vpack.c.bf16 %v397, %v396
        %v422 = vpack.c.bf16 %v399, %v398
        %v423 = vpack.c.bf16 %v401, %v400
        %v424 = vpack.c.bf16 %v403, %v402
        %v425 = vpack.c.bf16 %v405, %v404
        %v426 = vpack.c.bf16 %v407, %v406
        %v427 = vpack.c.bf16 %v409, %v408
        %v428 = vpack.c.bf16 %v411, %v410
        %v429 = vpack.c.bf16 %v413, %v412
        %v430 = vld [vmem:[#allocation6] sm:$0xf]
        %v431 = vld [vmem:[#allocation6 + $0x4] sm:$0xf]
        %v432 = vld [vmem:[#allocation6 + $0x8] sm:$0xf]
        %v433 = vld [vmem:[#allocation6 + $0xc] sm:$0xf]
        %v434 = vld [vmem:[#allocation6 + $0x10] sm:$0xf]
        %v435 = vld [vmem:[#allocation6 + $0x14] sm:$0xf]
        %v436 = vld [vmem:[#allocation6 + $0x18] sm:$0xf]
        %v437 = vld [vmem:[#allocation6 + $0x1c] sm:$0xf]
        %v438 = vld [vmem:[#allocation6 + $0x20] sm:$0xf]
        %v439 = vld [vmem:[#allocation6 + $0x24] sm:$0xf]
        %v440 = vld [vmem:[#allocation6 + $0x28] sm:$0xf]
        %v441 = vld [vmem:[#allocation6 + $0x2c] sm:$0xf]
        %v442 = vld [vmem:[#allocation6 + $0x30] sm:$0xf]
        %v443 = vld [vmem:[#allocation6 + $0x34] sm:$0xf]
        %v444 = vld [vmem:[#allocation6 + $0x38] sm:$0xf]
        %v445 = vld [vmem:[#allocation6 + $0x3c] sm:$0xf]
        %v446 = vld [vmem:[%s2] sm:$0x1]
        %v448 = vlaneseq
        %v449 = vshrl.u32 %v448, 7
        %v450 = vsub.s32 0, %v449
        %v451 = vrot.slane %v446, %v450
        %v469 = vunpack.c.l.b16 %v430
        %v470 = vunpack.c.l.b16 %v431
        %v471 = vunpack.c.l.b16 %v432
        %v472 = vunpack.c.l.b16 %v433
        %v473 = vunpack.c.l.b16 %v434
        %v474 = vunpack.c.l.b16 %v435
        %v475 = vunpack.c.l.b16 %v436
        %v476 = vunpack.c.l.b16 %v437
        %v477 = vunpack.c.l.b16 %v438
        %v478 = vunpack.c.l.b16 %v439
        %v479 = vunpack.c.l.b16 %v440
        %v480 = vunpack.c.l.b16 %v441
        %v481 = vunpack.c.l.b16 %v442
        %v482 = vunpack.c.l.b16 %v443
        %v483 = vunpack.c.l.b16 %v444
        %v484 = vunpack.c.l.b16 %v445
        %v485 = vpack.c.b16 %v470, %v469
        %v486 = vpack.c.b16 %v472, %v471
        %v487 = vpack.c.b16 %v474, %v473
        %v488 = vpack.c.b16 %v476, %v475
        %v489 = vpack.c.b16 %v478, %v477
        %v490 = vpack.c.b16 %v480, %v479
        %v491 = vpack.c.b16 %v482, %v481
        %v492 = vpack.c.b16 %v484, %v483
        %501 = vmatprep.subr.bf16.mxu0 0
        %502 = vmatpush1.bf16.msra.mxu0 %v492
        %503 = vmatprep.subr.bf16.mxu0 0
        %504 = vmatpush1.bf16.msra.mxu0 %v491
        %505 = vmatprep.subr.bf16.mxu0 0
        %506 = vmatpush1.bf16.msra.mxu0 %v490
        %507 = vmatprep.subr.bf16.mxu0 0
        %508 = vmatpush1.bf16.msra.mxu0 %v489
        %509 = vmatprep.subr.bf16.mxu0 0
        %510 = vmatpush1.bf16.msra.mxu0 %v488
        %511 = vmatprep.subr.bf16.mxu0 0
        %512 = vmatpush1.bf16.msra.mxu0 %v487
        %513 = vmatprep.subr.bf16.mxu0 0
        %514 = vmatpush1.bf16.msra.mxu0 %v486
        %515 = vmatprep.subr.bf16.mxu0 0
        %516 = vmatpush1.bf16.msra.mxu0 %v485
        %517 = vmatprep.subr.bf16.mxu0 0
        %518 = vmatpush2.bf16.msra.mxu0 0
        %519 = vmatprep.subr.bf16.mxu0 0
        %520 = vmatpush2.bf16.msra.mxu0 0
        %521 = vmatprep.subr.bf16.mxu0 0
        %522 = vmatpush2.bf16.msra.mxu0 0
        %523 = vmatprep.subr.bf16.mxu0 0
        %524 = vmatpush2.bf16.msra.mxu0 0
        %525 = vmatprep.subr.bf16.mxu0 0
        %526 = vmatpush2.bf16.msra.mxu0 0
        %527 = vmatprep.subr.bf16.mxu0 0
        %528 = vmatpush2.bf16.msra.mxu0 0
        %529 = vmatprep.subr.bf16.mxu0 0
        %530 = vmatpush2.bf16.msra.mxu0 0
        %531 = vmatprep.subr.bf16.mxu0 0
        %532 = vmatpush2.bf16.msra.mxu0 0
        %533 = vmatprep.mubr.bf16.mxu0 0
        %534 = vmatmul.mubr.bf16.gmra.mxu0 %v414
        %v535 = vpop.f32.mrf.mxu0
        %v536 = vadd.f32 %v451, %v535
        %v537 = vpop.f32.mrf.mxu0
        %v538 = vpop.f32.mrf.mxu0
        %v539 = vadd.f32 %v451, %v538
        %v540 = vpop.f32.mrf.mxu0
        %541 = vmatprep.mubr.bf16.mxu0 0
        %542 = vmatmul.mubr.bf16.gmra.mxu0 %v415
        %v543 = vpop.f32.mrf.mxu0
        %v544 = vadd.f32 %v451, %v543
        %v545 = vpop.f32.mrf.mxu0
        %v546 = vpop.f32.mrf.mxu0
        %v547 = vadd.f32 %v451, %v546
        %v548 = vpop.f32.mrf.mxu0
        %549 = vmatprep.mubr.bf16.mxu0 0
        %550 = vmatmul.mubr.bf16.gmra.mxu0 %v416
        %v551 = vpop.f32.mrf.mxu0
        %v552 = vadd.f32 %v451, %v551
        %v553 = vpop.f32.mrf.mxu0
        %v554 = vpop.f32.mrf.mxu0
        %v555 = vadd.f32 %v451, %v554
        %v556 = vpop.f32.mrf.mxu0
        %557 = vmatprep.mubr.bf16.mxu0 0
        %558 = vmatmul.mubr.bf16.gmra.mxu0 %v417
        %v559 = vpop.f32.mrf.mxu0
        %v560 = vadd.f32 %v451, %v559
        %v561 = vpop.f32.mrf.mxu0
        %v562 = vpop.f32.mrf.mxu0
        %v563 = vadd.f32 %v451, %v562
        %v564 = vpop.f32.mrf.mxu0
        %565 = vmatprep.mubr.bf16.mxu0 0
        %566 = vmatmul.mubr.bf16.gmra.mxu0 %v418
        %v567 = vpop.f32.mrf.mxu0
        %v568 = vadd.f32 %v451, %v567
        %v569 = vpop.f32.mrf.mxu0
        %v570 = vpop.f32.mrf.mxu0
        %v571 = vadd.f32 %v451, %v570
        %v572 = vpop.f32.mrf.mxu0
        %573 = vmatprep.mubr.bf16.mxu0 0
        %574 = vmatmul.mubr.bf16.gmra.mxu0 %v419
        %v575 = vpop.f32.mrf.mxu0
        %v576 = vadd.f32 %v451, %v575
        %v577 = vpop.f32.mrf.mxu0
        %v578 = vpop.f32.mrf.mxu0
        %v579 = vadd.f32 %v451, %v578
        %v580 = vpop.f32.mrf.mxu0
        %581 = vmatprep.mubr.bf16.mxu0 0
        %582 = vmatmul.mubr.bf16.gmra.mxu0 %v420
        %v583 = vpop.f32.mrf.mxu0
        %v584 = vadd.f32 %v451, %v583
        %v585 = vpop.f32.mrf.mxu0
        %v586 = vpop.f32.mrf.mxu0
        %v587 = vadd.f32 %v451, %v586
        %v588 = vpop.f32.mrf.mxu0
        %589 = vmatprep.mubr.bf16.mxu0 0
        %590 = vmatmul.mubr.bf16.gmra.mxu0 %v421
        %v591 = vpop.f32.mrf.mxu0
        %v592 = vadd.f32 %v451, %v591
        %v593 = vpop.f32.mrf.mxu0
        %v594 = vpop.f32.mrf.mxu0
        %v595 = vadd.f32 %v451, %v594
        %v596 = vpop.f32.mrf.mxu0
        %597 = vmatprep.mubr.bf16.mxu0 0
        %598 = vmatmul.mubr.bf16.gmra.mxu0 %v422
        %v599 = vpop.f32.mrf.mxu0
        %v600 = vadd.f32 %v451, %v599
        %v601 = vpop.f32.mrf.mxu0
        %v602 = vpop.f32.mrf.mxu0
        %v603 = vadd.f32 %v451, %v602
        %v604 = vpop.f32.mrf.mxu0
        %605 = vmatprep.mubr.bf16.mxu0 0
        %606 = vmatmul.mubr.bf16.gmra.mxu0 %v423
        %v607 = vpop.f32.mrf.mxu0
        %v608 = vadd.f32 %v451, %v607
        %v609 = vpop.f32.mrf.mxu0
        %v610 = vpop.f32.mrf.mxu0
        %v611 = vadd.f32 %v451, %v610
        %v612 = vpop.f32.mrf.mxu0
        %613 = vmatprep.mubr.bf16.mxu0 0
        %614 = vmatmul.mubr.bf16.gmra.mxu0 %v424
        %v615 = vpop.f32.mrf.mxu0
        %v616 = vadd.f32 %v451, %v615
        %v617 = vpop.f32.mrf.mxu0
        %v618 = vpop.f32.mrf.mxu0
        %v619 = vadd.f32 %v451, %v618
        %v620 = vpop.f32.mrf.mxu0
        %621 = vmatprep.mubr.bf16.mxu0 0
        %622 = vmatmul.mubr.bf16.gmra.mxu0 %v425
        %v623 = vpop.f32.mrf.mxu0
        %v624 = vadd.f32 %v451, %v623
        %v625 = vpop.f32.mrf.mxu0
        %v626 = vpop.f32.mrf.mxu0
        %v627 = vadd.f32 %v451, %v626
        %v628 = vpop.f32.mrf.mxu0
        %629 = vmatprep.mubr.bf16.mxu0 0
        %630 = vmatmul.mubr.bf16.gmra.mxu0 %v426
        %v631 = vpop.f32.mrf.mxu0
        %v632 = vadd.f32 %v451, %v631
        %v633 = vpop.f32.mrf.mxu0
        %v634 = vpop.f32.mrf.mxu0
        %v635 = vadd.f32 %v451, %v634
        %v636 = vpop.f32.mrf.mxu0
        %637 = vmatprep.mubr.bf16.mxu0 0
        %638 = vmatmul.mubr.bf16.gmra.mxu0 %v427
        %v639 = vpop.f32.mrf.mxu0
        %v640 = vadd.f32 %v451, %v639
        %v641 = vpop.f32.mrf.mxu0
        %v642 = vpop.f32.mrf.mxu0
        %v643 = vadd.f32 %v451, %v642
        %v644 = vpop.f32.mrf.mxu0
        %645 = vmatprep.mubr.bf16.mxu0 0
        %646 = vmatmul.mubr.bf16.gmra.mxu0 %v428
        %v647 = vpop.f32.mrf.mxu0
        %v648 = vadd.f32 %v451, %v647
        %v649 = vpop.f32.mrf.mxu0
        %v650 = vpop.f32.mrf.mxu0
        %v651 = vadd.f32 %v451, %v650
        %v652 = vpop.f32.mrf.mxu0
        %653 = vmatprep.mubr.bf16.mxu0 0
        %654 = vmatmul.mubr.bf16.gmra.mxu0 %v429
        %v655 = vpop.f32.mrf.mxu0
        %v656 = vadd.f32 %v451, %v655
        %v657 = vpop.f32.mrf.mxu0
        %v658 = vpop.f32.mrf.mxu0
        %v659 = vadd.f32 %v451, %v658
        %v660 = vpop.f32.mrf.mxu0
        %661 = vdwg.mxu0
        %v662 = vld [vmem:[#allocation8] sm:$0xf]
        %v663 = vld [vmem:[#allocation8 + $0x4] sm:$0xf]
        %v664 = vld [vmem:[#allocation8 + $0x8] sm:$0xf]
        %v665 = vld [vmem:[#allocation8 + $0xc] sm:$0xf]
        %v666 = vld [vmem:[#allocation8 + $0x10] sm:$0xf]
        %v667 = vld [vmem:[#allocation8 + $0x14] sm:$0xf]
        %v668 = vld [vmem:[#allocation8 + $0x18] sm:$0xf]
        %v669 = vld [vmem:[#allocation8 + $0x1c] sm:$0xf]
        %v670 = vld [vmem:[#allocation8 + $0x20] sm:$0xf]
        %v671 = vld [vmem:[#allocation8 + $0x24] sm:$0xf]
        %v672 = vld [vmem:[#allocation8 + $0x28] sm:$0xf]
        %v673 = vld [vmem:[#allocation8 + $0x2c] sm:$0xf]
        %v674 = vld [vmem:[#allocation8 + $0x30] sm:$0xf]
        %v675 = vld [vmem:[#allocation8 + $0x34] sm:$0xf]
        %v676 = vld [vmem:[#allocation8 + $0x38] sm:$0xf]
        %v677 = vld [vmem:[#allocation8 + $0x3c] sm:$0xf]
        %v678 = vld [vmem:[#allocation9] sm:$0x1]
        %v680 = vlaneseq
        %v681 = vshrl.u32 %v680, 7
        %v682 = vsub.s32 0, %v681
        %v683 = vrot.slane %v678, %v682
        %v701 = vunpack.c.l.b16 %v662
        %v702 = vunpack.c.l.b16 %v663
        %v703 = vunpack.c.l.b16 %v664
        %v704 = vunpack.c.l.b16 %v665
        %v705 = vunpack.c.l.b16 %v666
        %v706 = vunpack.c.l.b16 %v667
        %v707 = vunpack.c.l.b16 %v668
        %v708 = vunpack.c.l.b16 %v669
        %v709 = vunpack.c.l.b16 %v670
        %v710 = vunpack.c.l.b16 %v671
        %v711 = vunpack.c.l.b16 %v672
        %v712 = vunpack.c.l.b16 %v673
        %v713 = vunpack.c.l.b16 %v674
        %v714 = vunpack.c.l.b16 %v675
        %v715 = vunpack.c.l.b16 %v676
        %v716 = vunpack.c.l.b16 %v677
        %v717 = vpack.c.b16 %v702, %v701
        %v718 = vpack.c.b16 %v704, %v703
        %v719 = vpack.c.b16 %v706, %v705
        %v720 = vpack.c.b16 %v708, %v707
        %v721 = vpack.c.b16 %v710, %v709
        %v722 = vpack.c.b16 %v712, %v711
        %v723 = vpack.c.b16 %v714, %v713
        %v724 = vpack.c.b16 %v716, %v715
        %733 = vmatprep.subr.bf16.mxu0 0
        %734 = vmatpush1.bf16.msra.mxu0 %v724
        %735 = vmatprep.subr.bf16.mxu0 0
        %736 = vmatpush1.bf16.msra.mxu0 %v723
        %737 = vmatprep.subr.bf16.mxu0 0
        %738 = vmatpush1.bf16.msra.mxu0 %v722
        %739 = vmatprep.subr.bf16.mxu0 0
        %740 = vmatpush1.bf16.msra.mxu0 %v721
        %741 = vmatprep.subr.bf16.mxu0 0
        %742 = vmatpush1.bf16.msra.mxu0 %v720
        %743 = vmatprep.subr.bf16.mxu0 0
        %744 = vmatpush1.bf16.msra.mxu0 %v719
        %745 = vmatprep.subr.bf16.mxu0 0
        %746 = vmatpush1.bf16.msra.mxu0 %v718
        %747 = vmatprep.subr.bf16.mxu0 0
        %748 = vmatpush1.bf16.msra.mxu0 %v717
        %749 = vmatprep.subr.bf16.mxu0 0
        %750 = vmatpush2.bf16.msra.mxu0 0
        %751 = vmatprep.subr.bf16.mxu0 0
        %752 = vmatpush2.bf16.msra.mxu0 0
        %753 = vmatprep.subr.bf16.mxu0 0
        %754 = vmatpush2.bf16.msra.mxu0 0
        %755 = vmatprep.subr.bf16.mxu0 0
        %756 = vmatpush2.bf16.msra.mxu0 0
        %757 = vmatprep.subr.bf16.mxu0 0
        %758 = vmatpush2.bf16.msra.mxu0 0
        %759 = vmatprep.subr.bf16.mxu0 0
        %760 = vmatpush2.bf16.msra.mxu0 0
        %761 = vmatprep.subr.bf16.mxu0 0
        %762 = vmatpush2.bf16.msra.mxu0 0
        %763 = vmatprep.subr.bf16.mxu0 0
        %764 = vmatpush2.bf16.msra.mxu0 0
        %765 = vmatprep.mubr.bf16.mxu0 0
        %766 = vmatmul.mubr.bf16.gmra.mxu0 %v414
        %v767 = vpop.f32.mrf.mxu0
        %v768 = vadd.f32 %v683, %v767
        %v769 = vpop.f32.mrf.mxu0
        %v770 = vpop.f32.mrf.mxu0
        %v771 = vadd.f32 %v683, %v770
        %v772 = vpop.f32.mrf.mxu0
        %773 = vmatprep.mubr.bf16.mxu0 0
        %774 = vmatmul.mubr.bf16.gmra.mxu0 %v415
        %v775 = vpop.f32.mrf.mxu0
        %v776 = vadd.f32 %v683, %v775
        %v777 = vpop.f32.mrf.mxu0
        %v778 = vpop.f32.mrf.mxu0
        %v779 = vadd.f32 %v683, %v778
        %v780 = vpop.f32.mrf.mxu0
        %781 = vmatprep.mubr.bf16.mxu0 0
        %782 = vmatmul.mubr.bf16.gmra.mxu0 %v416
        %v783 = vpop.f32.mrf.mxu0
        %v784 = vadd.f32 %v683, %v783
        %v785 = vpop.f32.mrf.mxu0
        %v786 = vpop.f32.mrf.mxu0
        %v787 = vadd.f32 %v683, %v786
        %v788 = vpop.f32.mrf.mxu0
        %789 = vmatprep.mubr.bf16.mxu0 0
        %790 = vmatmul.mubr.bf16.gmra.mxu0 %v417
        %v791 = vpop.f32.mrf.mxu0
        %v792 = vadd.f32 %v683, %v791
        %v793 = vpop.f32.mrf.mxu0
        %v794 = vpop.f32.mrf.mxu0
        %v795 = vadd.f32 %v683, %v794
        %v796 = vpop.f32.mrf.mxu0
        %797 = vmatprep.mubr.bf16.mxu0 0
        %798 = vmatmul.mubr.bf16.gmra.mxu0 %v418
        %v799 = vpop.f32.mrf.mxu0
        %v800 = vadd.f32 %v683, %v799
        %v801 = vpop.f32.mrf.mxu0
        %v802 = vpop.f32.mrf.mxu0
        %v803 = vadd.f32 %v683, %v802
        %v804 = vpop.f32.mrf.mxu0
        %805 = vmatprep.mubr.bf16.mxu0 0
        %806 = vmatmul.mubr.bf16.gmra.mxu0 %v419
        %v807 = vpop.f32.mrf.mxu0
        %v808 = vadd.f32 %v683, %v807
        %v809 = vpop.f32.mrf.mxu0
        %v810 = vpop.f32.mrf.mxu0
        %v811 = vadd.f32 %v683, %v810
        %v812 = vpop.f32.mrf.mxu0
        %813 = vmatprep.mubr.bf16.mxu0 0
        %814 = vmatmul.mubr.bf16.gmra.mxu0 %v420
        %v815 = vpop.f32.mrf.mxu0
        %v816 = vadd.f32 %v683, %v815
        %v817 = vpop.f32.mrf.mxu0
        %v818 = vpop.f32.mrf.mxu0
        %v819 = vadd.f32 %v683, %v818
        %v820 = vpop.f32.mrf.mxu0
        %821 = vmatprep.mubr.bf16.mxu0 0
        %822 = vmatmul.mubr.bf16.gmra.mxu0 %v421
        %v823 = vpop.f32.mrf.mxu0
        %v824 = vadd.f32 %v683, %v823
        %v825 = vpop.f32.mrf.mxu0
        %v826 = vpop.f32.mrf.mxu0
        %v827 = vadd.f32 %v683, %v826
        %v828 = vpop.f32.mrf.mxu0
        %829 = vmatprep.mubr.bf16.mxu0 0
        %830 = vmatmul.mubr.bf16.gmra.mxu0 %v422
        %v831 = vpop.f32.mrf.mxu0
        %v832 = vadd.f32 %v683, %v831
        %v833 = vpop.f32.mrf.mxu0
        %v834 = vpop.f32.mrf.mxu0
        %v835 = vadd.f32 %v683, %v834
        %v836 = vpop.f32.mrf.mxu0
        %837 = vmatprep.mubr.bf16.mxu0 0
        %838 = vmatmul.mubr.bf16.gmra.mxu0 %v423
        %v839 = vpop.f32.mrf.mxu0
        %v840 = vadd.f32 %v683, %v839
        %v841 = vpop.f32.mrf.mxu0
        %v842 = vpop.f32.mrf.mxu0
        %v843 = vadd.f32 %v683, %v842
        %v844 = vpop.f32.mrf.mxu0
        %845 = vmatprep.mubr.bf16.mxu0 0
        %846 = vmatmul.mubr.bf16.gmra.mxu0 %v424
        %v847 = vpop.f32.mrf.mxu0
        %v848 = vadd.f32 %v683, %v847
        %v849 = vpop.f32.mrf.mxu0
        %v850 = vpop.f32.mrf.mxu0
        %v851 = vadd.f32 %v683, %v850
        %v852 = vpop.f32.mrf.mxu0
        %853 = vmatprep.mubr.bf16.mxu0 0
        %854 = vmatmul.mubr.bf16.gmra.mxu0 %v425
        %v855 = vpop.f32.mrf.mxu0
        %v856 = vadd.f32 %v683, %v855
        %v857 = vpop.f32.mrf.mxu0
        %v858 = vpop.f32.mrf.mxu0
        %v859 = vadd.f32 %v683, %v858
        %v860 = vpop.f32.mrf.mxu0
        %861 = vmatprep.mubr.bf16.mxu0 0
        %862 = vmatmul.mubr.bf16.gmra.mxu0 %v426
        %v863 = vpop.f32.mrf.mxu0
        %v864 = vadd.f32 %v683, %v863
        %v865 = vpop.f32.mrf.mxu0
        %v866 = vpop.f32.mrf.mxu0
        %v867 = vadd.f32 %v683, %v866
        %v868 = vpop.f32.mrf.mxu0
        %869 = vmatprep.mubr.bf16.mxu0 0
        %870 = vmatmul.mubr.bf16.gmra.mxu0 %v427
        %v871 = vpop.f32.mrf.mxu0
        %v872 = vadd.f32 %v683, %v871
        %v873 = vpop.f32.mrf.mxu0
        %v874 = vpop.f32.mrf.mxu0
        %v875 = vadd.f32 %v683, %v874
        %v876 = vpop.f32.mrf.mxu0
        %877 = vmatprep.mubr.bf16.mxu0 0
        %878 = vmatmul.mubr.bf16.gmra.mxu0 %v428
        %v879 = vpop.f32.mrf.mxu0
        %v880 = vadd.f32 %v683, %v879
        %v881 = vpop.f32.mrf.mxu0
        %v882 = vpop.f32.mrf.mxu0
        %v883 = vadd.f32 %v683, %v882
        %v884 = vpop.f32.mrf.mxu0
        %885 = vmatprep.mubr.bf16.mxu0 0
        %886 = vmatmul.mubr.bf16.gmra.mxu0 %v429
        %v887 = vpop.f32.mrf.mxu0
        %v888 = vadd.f32 %v683, %v887
        %v889 = vpop.f32.mrf.mxu0
        %v890 = vpop.f32.mrf.mxu0
        %v891 = vadd.f32 %v683, %v890
        %v892 = vpop.f32.mrf.mxu0
        %893 = vdwg.mxu0
        %v894 = vxor.u32 %v768, 2147483648
        %v895 = vxor.u32 %v771, 2147483648
        %v896 = vxor.u32 %v776, 2147483648
        %v897 = vxor.u32 %v779, 2147483648
        %v898 = vxor.u32 %v784, 2147483648
        %v899 = vxor.u32 %v787, 2147483648
        %v900 = vxor.u32 %v792, 2147483648
        %v901 = vxor.u32 %v795, 2147483648
        %v902 = vxor.u32 %v800, 2147483648
        %v903 = vxor.u32 %v803, 2147483648
        %v904 = vxor.u32 %v808, 2147483648
        %v905 = vxor.u32 %v811, 2147483648
        %v906 = vxor.u32 %v816, 2147483648
        %v907 = vxor.u32 %v819, 2147483648
        %v908 = vxor.u32 %v824, 2147483648
        %v909 = vxor.u32 %v827, 2147483648
        %v910 = vxor.u32 %v832, 2147483648
        %v911 = vxor.u32 %v835, 2147483648
        %v912 = vxor.u32 %v840, 2147483648
        %v913 = vxor.u32 %v843, 2147483648
        %v914 = vxor.u32 %v848, 2147483648
        %v915 = vxor.u32 %v851, 2147483648
        %v916 = vxor.u32 %v856, 2147483648
        %v917 = vxor.u32 %v859, 2147483648
        %v918 = vxor.u32 %v864, 2147483648
        %v919 = vxor.u32 %v867, 2147483648
        %v920 = vxor.u32 %v872, 2147483648
        %v921 = vxor.u32 %v875, 2147483648
        %v922 = vxor.u32 %v880, 2147483648
        %v923 = vxor.u32 %v883, 2147483648
        %v924 = vxor.u32 %v888, 2147483648
        %v925 = vxor.u32 %v891, 2147483648
        %v926 = vmul.f32 %v894, 1.442695
        %v927 = vpow.pop %v926
        %v928 = vmul.f32 %v895, 1.442695
        %v929 = vpow.pop %v928
        %v930 = vmul.f32 %v896, 1.442695
        %v931 = vpow.pop %v930
        %v932 = vmul.f32 %v897, 1.442695
        %v933 = vpow.pop %v932
        %v934 = vmul.f32 %v898, 1.442695
        %v935 = vpow.pop %v934
        %v936 = vmul.f32 %v899, 1.442695
        %v937 = vpow.pop %v936
        %v938 = vmul.f32 %v900, 1.442695
        %v939 = vpow.pop %v938
        %v940 = vmul.f32 %v901, 1.442695
        %v941 = vpow.pop %v940
        %v942 = vmul.f32 %v902, 1.442695
        %v943 = vpow.pop %v942
        %v944 = vmul.f32 %v903, 1.442695
        %v945 = vpow.pop %v944
        %v946 = vmul.f32 %v904, 1.442695
        %v947 = vpow.pop %v946
        %v948 = vmul.f32 %v905, 1.442695
        %v949 = vpow.pop %v948
        %v950 = vmul.f32 %v906, 1.442695
        %v951 = vpow.pop %v950
        %v952 = vmul.f32 %v907, 1.442695
        %v953 = vpow.pop %v952
        %v954 = vmul.f32 %v908, 1.442695
        %v955 = vpow.pop %v954
        %v956 = vmul.f32 %v909, 1.442695
        %v957 = vpow.pop %v956
        %v958 = vmul.f32 %v910, 1.442695
        %v959 = vpow.pop %v958
        %v960 = vmul.f32 %v911, 1.442695
        %v961 = vpow.pop %v960
        %v962 = vmul.f32 %v912, 1.442695
        %v963 = vpow.pop %v962
        %v964 = vmul.f32 %v913, 1.442695
        %v965 = vpow.pop %v964
        %v966 = vmul.f32 %v914, 1.442695
        %v967 = vpow.pop %v966
        %v968 = vmul.f32 %v915, 1.442695
        %v969 = vpow.pop %v968
        %v970 = vmul.f32 %v916, 1.442695
        %v971 = vpow.pop %v970
        %v972 = vmul.f32 %v917, 1.442695
        %v973 = vpow.pop %v972
        %v974 = vmul.f32 %v918, 1.442695
        %v975 = vpow.pop %v974
        %v976 = vmul.f32 %v919, 1.442695
        %v977 = vpow.pop %v976
        %v978 = vmul.f32 %v920, 1.442695
        %v979 = vpow.pop %v978
        %v980 = vmul.f32 %v921, 1.442695
        %v981 = vpow.pop %v980
        %v982 = vmul.f32 %v922, 1.442695
        %v983 = vpow.pop %v982
        %v984 = vmul.f32 %v923, 1.442695
        %v985 = vpow.pop %v984
        %v986 = vmul.f32 %v924, 1.442695
        %v987 = vpow.pop %v986
        %v988 = vmul.f32 %v925, 1.442695
        %v989 = vpow.pop %v988
        %v990 = vadd.f32 %v927, 1.0
        %v991 = vadd.f32 %v929, 1.0
        %v992 = vadd.f32 %v931, 1.0
        %v993 = vadd.f32 %v933, 1.0
        %v994 = vadd.f32 %v935, 1.0
        %v995 = vadd.f32 %v937, 1.0
        %v996 = vadd.f32 %v939, 1.0
        %v997 = vadd.f32 %v941, 1.0
        %v998 = vadd.f32 %v943, 1.0
        %v999 = vadd.f32 %v945, 1.0
        %v1000 = vadd.f32 %v947, 1.0
        %v1001 = vadd.f32 %v949, 1.0
        %v1002 = vadd.f32 %v951, 1.0
        %v1003 = vadd.f32 %v953, 1.0
        %v1004 = vadd.f32 %v955, 1.0
        %v1005 = vadd.f32 %v957, 1.0
        %v1006 = vadd.f32 %v959, 1.0
        %v1007 = vadd.f32 %v961, 1.0
        %v1008 = vadd.f32 %v963, 1.0
        %v1009 = vadd.f32 %v965, 1.0
        %v1010 = vadd.f32 %v967, 1.0
        %v1011 = vadd.f32 %v969, 1.0
        %v1012 = vadd.f32 %v971, 1.0
        %v1013 = vadd.f32 %v973, 1.0
        %v1014 = vadd.f32 %v975, 1.0
        %v1015 = vadd.f32 %v977, 1.0
        %v1016 = vadd.f32 %v979, 1.0
        %v1017 = vadd.f32 %v981, 1.0
        %v1018 = vadd.f32 %v983, 1.0
        %v1019 = vadd.f32 %v985, 1.0
        %v1020 = vadd.f32 %v987, 1.0
        %v1021 = vadd.f32 %v989, 1.0
        %v1022 = vrcp.pop %v990
        %v1023 = vmul.f32 1.0, %v1022
        %v1024 = vrcp.pop %v991
        %v1025 = vmul.f32 1.0, %v1024
        %v1026 = vrcp.pop %v992
        %v1027 = vmul.f32 1.0, %v1026
        %v1028 = vrcp.pop %v993
        %v1029 = vmul.f32 1.0, %v1028
        %v1030 = vrcp.pop %v994
        %v1031 = vmul.f32 1.0, %v1030
        %v1032 = vrcp.pop %v995
        %v1033 = vmul.f32 1.0, %v1032
        %v1034 = vrcp.pop %v996
        %v1035 = vmul.f32 1.0, %v1034
        %v1036 = vrcp.pop %v997
        %v1037 = vmul.f32 1.0, %v1036
        %v1038 = vrcp.pop %v998
        %v1039 = vmul.f32 1.0, %v1038
        %v1040 = vrcp.pop %v999
        %v1041 = vmul.f32 1.0, %v1040
        %v1042 = vrcp.pop %v1000
        %v1043 = vmul.f32 1.0, %v1042
        %v1044 = vrcp.pop %v1001
        %v1045 = vmul.f32 1.0, %v1044
        %v1046 = vrcp.pop %v1002
        %v1047 = vmul.f32 1.0, %v1046
        %v1048 = vrcp.pop %v1003
        %v1049 = vmul.f32 1.0, %v1048
        %v1050 = vrcp.pop %v1004
        %v1051 = vmul.f32 1.0, %v1050
        %v1052 = vrcp.pop %v1005
        %v1053 = vmul.f32 1.0, %v1052
        %v1054 = vrcp.pop %v1006
        %v1055 = vmul.f32 1.0, %v1054
        %v1056 = vrcp.pop %v1007
        %v1057 = vmul.f32 1.0, %v1056
        %v1058 = vrcp.pop %v1008
        %v1059 = vmul.f32 1.0, %v1058
        %v1060 = vrcp.pop %v1009
        %v1061 = vmul.f32 1.0, %v1060
        %v1062 = vrcp.pop %v1010
        %v1063 = vmul.f32 1.0, %v1062
        %v1064 = vrcp.pop %v1011
        %v1065 = vmul.f32 1.0, %v1064
        %v1066 = vrcp.pop %v1012
        %v1067 = vmul.f32 1.0, %v1066
        %v1068 = vrcp.pop %v1013
        %v1069 = vmul.f32 1.0, %v1068
        %v1070 = vrcp.pop %v1014
        %v1071 = vmul.f32 1.0, %v1070
        %v1072 = vrcp.pop %v1015
        %v1073 = vmul.f32 1.0, %v1072
        %v1074 = vrcp.pop %v1016
        %v1075 = vmul.f32 1.0, %v1074
        %v1076 = vrcp.pop %v1017
        %v1077 = vmul.f32 1.0, %v1076
        %v1078 = vrcp.pop %v1018
        %v1079 = vmul.f32 1.0, %v1078
        %v1080 = vrcp.pop %v1019
        %v1081 = vmul.f32 1.0, %v1080
        %v1082 = vrcp.pop %v1020
        %v1083 = vmul.f32 1.0, %v1082
        %v1084 = vrcp.pop %v1021
        %v1085 = vmul.f32 1.0, %v1084
        %v1086 = vmul.f32 %v536, %v1023
        %v1087 = vmul.f32 %v539, %v1025
        %v1088 = vmul.f32 %v544, %v1027
        %v1089 = vmul.f32 %v547, %v1029
        %v1090 = vmul.f32 %v552, %v1031
        %v1091 = vmul.f32 %v555, %v1033
        %v1092 = vmul.f32 %v560, %v1035
        %v1093 = vmul.f32 %v563, %v1037
        %v1094 = vmul.f32 %v568, %v1039
        %v1095 = vmul.f32 %v571, %v1041
        %v1096 = vmul.f32 %v576, %v1043
        %v1097 = vmul.f32 %v579, %v1045
        %v1098 = vmul.f32 %v584, %v1047
        %v1099 = vmul.f32 %v587, %v1049
        %v1100 = vmul.f32 %v592, %v1051
        %v1101 = vmul.f32 %v595, %v1053
        %v1102 = vmul.f32 %v600, %v1055
        %v1103 = vmul.f32 %v603, %v1057
        %v1104 = vmul.f32 %v608, %v1059
        %v1105 = vmul.f32 %v611, %v1061
        %v1106 = vmul.f32 %v616, %v1063
        %v1107 = vmul.f32 %v619, %v1065
        %v1108 = vmul.f32 %v624, %v1067
        %v1109 = vmul.f32 %v627, %v1069
        %v1110 = vmul.f32 %v632, %v1071
        %v1111 = vmul.f32 %v635, %v1073
        %v1112 = vmul.f32 %v640, %v1075
        %v1113 = vmul.f32 %v643, %v1077
        %v1114 = vmul.f32 %v648, %v1079
        %v1115 = vmul.f32 %v651, %v1081
        %v1116 = vmul.f32 %v656, %v1083
        %v1117 = vmul.f32 %v659, %v1085
        %v1118 = vld [vmem:[%s5] sm:$0x7f]
        %v1119 = vld [vmem:[%s6] sm:$0x1]
        %1120 = vst [vmem:[#allocation2 + $0x3] sm:$0xff] %v1086
        %1121 = vst [vmem:[#allocation2 + $0xb] sm:$0xff] %v1087
        %1122 = vst [vmem:[#allocation2 + $0x13] sm:$0xff] %v1088
        %1123 = vst [vmem:[#allocation2 + $0x1b] sm:$0xff] %v1089
        %1124 = vst [vmem:[#allocation2 + $0x23] sm:$0xff] %v1090
        %1125 = vst [vmem:[#allocation2 + $0x2b] sm:$0xff] %v1091
        %1126 = vst [vmem:[#allocation2 + $0x33] sm:$0xff] %v1092
        %1127 = vst [vmem:[#allocation2 + $0x3b] sm:$0xff] %v1093
        %v1128 = vld [vmem:[#allocation2] sm:$0xff]
        %v1129 = vld [vmem:[#allocation2 + $0x8] sm:$0xff]
        %v1130 = vld [vmem:[#allocation2 + $0x10] sm:$0xff]
        %v1131 = vld [vmem:[#allocation2 + $0x18] sm:$0xff]
        %v1132 = vld [vmem:[#allocation2 + $0x20] sm:$0xff]
        %v1133 = vld [vmem:[#allocation2 + $0x28] sm:$0xff]
        %v1134 = vld [vmem:[#allocation2 + $0x30] sm:$0xff]
        %v1135 = vld [vmem:[#allocation2 + $0x38] sm:$0xff]
        %v1136 = vlaneseq
        %v1137 = vshrl.u32 %v1136, 7
        %v1138 = vsub.s32 0, %v1137
        %v1139 = vrot.slane %v1118, %v1138
        %v1140 = vmul.f32 %v1128, %v1139
        %v1141 = vmul.f32 %v1129, %v1139
        %v1142 = vmul.f32 %v1130, %v1139
        %v1143 = vmul.f32 %v1131, %v1139
        %v1144 = vmul.f32 %v1132, %v1139
        %v1145 = vmul.f32 %v1133, %v1139
        %v1146 = vmul.f32 %v1134, %v1139
        %v1147 = vmul.f32 %v1135, %v1139
        %v1148 = vld [vmem:[#allocation2 + $0x1] sm:$0xff]
        %v1149 = vld [vmem:[#allocation2 + $0x9] sm:$0xff]
        %v1150 = vld [vmem:[#allocation2 + $0x11] sm:$0xff]
        %v1151 = vld [vmem:[#allocation2 + $0x19] sm:$0xff]
        %v1152 = vld [vmem:[#allocation2 + $0x21] sm:$0xff]
        %v1153 = vld [vmem:[#allocation2 + $0x29] sm:$0xff]
        %v1154 = vld [vmem:[#allocation2 + $0x31] sm:$0xff]
        %v1155 = vld [vmem:[#allocation2 + $0x39] sm:$0xff]
        %v1156 = vlaneseq
        %v1157 = vshrl.u32 %v1156, 7
        %v1158 = vsub.s32 1, %v1157
        %v1159 = vrot.slane %v1118, %v1158
        %v1160 = vmul.f32 %v1148, %v1159
        %v1161 = vmul.f32 %v1149, %v1159
        %v1162 = vmul.f32 %v1150, %v1159
        %v1163 = vmul.f32 %v1151, %v1159
        %v1164 = vmul.f32 %v1152, %v1159
        %v1165 = vmul.f32 %v1153, %v1159
        %v1166 = vmul.f32 %v1154, %v1159
        %v1167 = vmul.f32 %v1155, %v1159
        %v1168 = vadd.f32 %v1140, %v1160
        %v1169 = vadd.f32 %v1141, %v1161
        %v1170 = vadd.f32 %v1142, %v1162
        %v1171 = vadd.f32 %v1143, %v1163
        %v1172 = vadd.f32 %v1144, %v1164
        %v1173 = vadd.f32 %v1145, %v1165
        %v1174 = vadd.f32 %v1146, %v1166
        %v1175 = vadd.f32 %v1147, %v1167
        %v1176 = vld [vmem:[#allocation2 + $0x2] sm:$0xff]
        %v1177 = vld [vmem:[#allocation2 + $0xa] sm:$0xff]
        %v1178 = vld [vmem:[#allocation2 + $0x12] sm:$0xff]
        %v1179 = vld [vmem:[#allocation2 + $0x1a] sm:$0xff]
        %v1180 = vld [vmem:[#allocation2 + $0x22] sm:$0xff]
        %v1181 = vld [vmem:[#allocation2 + $0x2a] sm:$0xff]
        %v1182 = vld [vmem:[#allocation2 + $0x32] sm:$0xff]
        %v1183 = vld [vmem:[#allocation2 + $0x3a] sm:$0xff]
        %v1184 = vlaneseq
        %v1185 = vshrl.u32 %v1184, 7
        %v1186 = vsub.s32 2, %v1185
        %v1187 = vrot.slane %v1118, %v1186
        %v1188 = vmul.f32 %v1176, %v1187
        %v1189 = vmul.f32 %v1177, %v1187
        %v1190 = vmul.f32 %v1178, %v1187
        %v1191 = vmul.f32 %v1179, %v1187
        %v1192 = vmul.f32 %v1180, %v1187
        %v1193 = vmul.f32 %v1181, %v1187
        %v1194 = vmul.f32 %v1182, %v1187
        %v1195 = vmul.f32 %v1183, %v1187
        %v1196 = vadd.f32 %v1168, %v1188
        %v1197 = vadd.f32 %v1169, %v1189
        %v1198 = vadd.f32 %v1170, %v1190
        %v1199 = vadd.f32 %v1171, %v1191
        %v1200 = vadd.f32 %v1172, %v1192
        %v1201 = vadd.f32 %v1173, %v1193
        %v1202 = vadd.f32 %v1174, %v1194
        %v1203 = vadd.f32 %v1175, %v1195
        %v1204 = vld [vmem:[#allocation2 + $0x3] sm:$0xff]
        %v1205 = vld [vmem:[#allocation2 + $0xb] sm:$0xff]
        %v1206 = vld [vmem:[#allocation2 + $0x13] sm:$0xff]
        %v1207 = vld [vmem:[#allocation2 + $0x1b] sm:$0xff]
        %v1208 = vld [vmem:[#allocation2 + $0x23] sm:$0xff]
        %v1209 = vld [vmem:[#allocation2 + $0x2b] sm:$0xff]
        %v1210 = vld [vmem:[#allocation2 + $0x33] sm:$0xff]
        %v1211 = vld [vmem:[#allocation2 + $0x3b] sm:$0xff]
        %v1212 = vlaneseq
        %v1213 = vshrl.u32 %v1212, 7
        %v1214 = vsub.s32 3, %v1213
        %v1215 = vrot.slane %v1118, %v1214
        %v1216 = vmul.f32 %v1204, %v1215
        %v1217 = vmul.f32 %v1205, %v1215
        %v1218 = vmul.f32 %v1206, %v1215
        %v1219 = vmul.f32 %v1207, %v1215
        %v1220 = vmul.f32 %v1208, %v1215
        %v1221 = vmul.f32 %v1209, %v1215
        %v1222 = vmul.f32 %v1210, %v1215
        %v1223 = vmul.f32 %v1211, %v1215
        %v1224 = vadd.f32 %v1196, %v1216
        %v1225 = vadd.f32 %v1197, %v1217
        %v1226 = vadd.f32 %v1198, %v1218
        %v1227 = vadd.f32 %v1199, %v1219
        %v1228 = vadd.f32 %v1200, %v1220
        %v1229 = vadd.f32 %v1201, %v1221
        %v1230 = vadd.f32 %v1202, %v1222
        %v1231 = vadd.f32 %v1203, %v1223
        %v1232 = vld [vmem:[#allocation2 + $0x4] sm:$0xff]
        %v1233 = vld [vmem:[#allocation2 + $0xc] sm:$0xff]
        %v1234 = vld [vmem:[#allocation2 + $0x14] sm:$0xff]
        %v1235 = vld [vmem:[#allocation2 + $0x1c] sm:$0xff]
        %v1236 = vld [vmem:[#allocation2 + $0x24] sm:$0xff]
        %v1237 = vld [vmem:[#allocation2 + $0x2c] sm:$0xff]
        %v1238 = vld [vmem:[#allocation2 + $0x34] sm:$0xff]
        %v1239 = vld [vmem:[#allocation2 + $0x3c] sm:$0xff]
        %v1240 = vlaneseq
        %v1241 = vshrl.u32 %v1240, 7
        %v1242 = vsub.s32 4, %v1241
        %v1243 = vrot.slane %v1118, %v1242
        %v1244 = vmul.f32 %v1232, %v1243
        %v1245 = vmul.f32 %v1233, %v1243
        %v1246 = vmul.f32 %v1234, %v1243
        %v1247 = vmul.f32 %v1235, %v1243
        %v1248 = vmul.f32 %v1236, %v1243
        %v1249 = vmul.f32 %v1237, %v1243
        %v1250 = vmul.f32 %v1238, %v1243
        %v1251 = vmul.f32 %v1239, %v1243
        %v1252 = vadd.f32 %v1224, %v1244
        %v1253 = vadd.f32 %v1225, %v1245
        %v1254 = vadd.f32 %v1226, %v1246
        %v1255 = vadd.f32 %v1227, %v1247
        %v1256 = vadd.f32 %v1228, %v1248
        %v1257 = vadd.f32 %v1229, %v1249
        %v1258 = vadd.f32 %v1230, %v1250
        %v1259 = vadd.f32 %v1231, %v1251
        %v1260 = vld [vmem:[#allocation2 + $0x5] sm:$0xff]
        %v1261 = vld [vmem:[#allocation2 + $0xd] sm:$0xff]
        %v1262 = vld [vmem:[#allocation2 + $0x15] sm:$0xff]
        %v1263 = vld [vmem:[#allocation2 + $0x1d] sm:$0xff]
        %v1264 = vld [vmem:[#allocation2 + $0x25] sm:$0xff]
        %v1265 = vld [vmem:[#allocation2 + $0x2d] sm:$0xff]
        %v1266 = vld [vmem:[#allocation2 + $0x35] sm:$0xff]
        %v1267 = vld [vmem:[#allocation2 + $0x3d] sm:$0xff]
        %v1268 = vlaneseq
        %v1269 = vshrl.u32 %v1268, 7
        %v1270 = vsub.s32 5, %v1269
        %v1271 = vrot.slane %v1118, %v1270
        %v1272 = vmul.f32 %v1260, %v1271
        %v1273 = vmul.f32 %v1261, %v1271
        %v1274 = vmul.f32 %v1262, %v1271
        %v1275 = vmul.f32 %v1263, %v1271
        %v1276 = vmul.f32 %v1264, %v1271
        %v1277 = vmul.f32 %v1265, %v1271
        %v1278 = vmul.f32 %v1266, %v1271
        %v1279 = vmul.f32 %v1267, %v1271
        %v1280 = vadd.f32 %v1252, %v1272
        %v1281 = vadd.f32 %v1253, %v1273
        %v1282 = vadd.f32 %v1254, %v1274
        %v1283 = vadd.f32 %v1255, %v1275
        %v1284 = vadd.f32 %v1256, %v1276
        %v1285 = vadd.f32 %v1257, %v1277
        %v1286 = vadd.f32 %v1258, %v1278
        %v1287 = vadd.f32 %v1259, %v1279
        %v1288 = vld [vmem:[#allocation2 + $0x6] sm:$0xff]
        %v1289 = vld [vmem:[#allocation2 + $0xe] sm:$0xff]
        %v1290 = vld [vmem:[#allocation2 + $0x16] sm:$0xff]
        %v1291 = vld [vmem:[#allocation2 + $0x1e] sm:$0xff]
        %v1292 = vld [vmem:[#allocation2 + $0x26] sm:$0xff]
        %v1293 = vld [vmem:[#allocation2 + $0x2e] sm:$0xff]
        %v1294 = vld [vmem:[#allocation2 + $0x36] sm:$0xff]
        %v1295 = vld [vmem:[#allocation2 + $0x3e] sm:$0xff]
        %v1296 = vlaneseq
        %v1297 = vshrl.u32 %v1296, 7
        %v1298 = vsub.s32 6, %v1297
        %v1299 = vrot.slane %v1118, %v1298
        %v1300 = vmul.f32 %v1288, %v1299
        %v1301 = vmul.f32 %v1289, %v1299
        %v1302 = vmul.f32 %v1290, %v1299
        %v1303 = vmul.f32 %v1291, %v1299
        %v1304 = vmul.f32 %v1292, %v1299
        %v1305 = vmul.f32 %v1293, %v1299
        %v1306 = vmul.f32 %v1294, %v1299
        %v1307 = vmul.f32 %v1295, %v1299
        %v1308 = vadd.f32 %v1280, %v1300
        %v1309 = vadd.f32 %v1281, %v1301
        %v1310 = vadd.f32 %v1282, %v1302
        %v1311 = vadd.f32 %v1283, %v1303
        %v1312 = vadd.f32 %v1284, %v1304
        %v1313 = vadd.f32 %v1285, %v1305
        %v1314 = vadd.f32 %v1286, %v1306
        %v1315 = vadd.f32 %v1287, %v1307
        %v1317 = vlaneseq
        %v1318 = vshrl.u32 %v1317, 7
        %v1319 = vsub.s32 0, %v1318
        %v1320 = vrot.slane %v1119, %v1319
        %v1322 = vadd.f32 %v1308, %v1320
        %v1323 = vadd.f32 %v1309, %v1320
        %v1324 = vadd.f32 %v1310, %v1320
        %v1325 = vadd.f32 %v1311, %v1320
        %v1326 = vadd.f32 %v1312, %v1320
        %v1327 = vadd.f32 %v1313, %v1320
        %v1328 = vadd.f32 %v1314, %v1320
        %v1329 = vadd.f32 %v1315, %v1320
        %1330 = vst [vmem:[%s362] sm:$0xff] %v1322
        %1331 = vst [vmem:[%s362 + $0x8] sm:$0xff] %v1323
        %1332 = vst [vmem:[%s362 + $0x10] sm:$0xff] %v1324
        %1333 = vst [vmem:[%s362 + $0x18] sm:$0xff] %v1325
        %1334 = vst [vmem:[%s362 + $0x20] sm:$0xff] %v1326
        %1335 = vst [vmem:[%s362 + $0x28] sm:$0xff] %v1327
        %1336 = vst [vmem:[%s362 + $0x30] sm:$0xff] %v1328
        %1337 = vst [vmem:[%s362 + $0x38] sm:$0xff] %v1329
        %v1338 = vadd.f32 %v1322, %v1323
        %v1339 = vadd.f32 %v1338, %v1324
        %v1340 = vadd.f32 %v1339, %v1325
        %v1341 = vadd.f32 %v1340, %v1326
        %v1342 = vadd.f32 %v1341, %v1327
        %v1343 = vadd.f32 %v1342, %v1328
        %v1344 = vadd.f32 %v1343, %v1329
        %v1345 = vrot.slane %v1344, 4
        %v1346 = vadd.f32 %v1344, %v1345
        %v1347 = vrot.slane %v1346, 2
        %v1348 = vadd.f32 %v1346, %v1347
        %v1349 = vrot.slane %v1348, 1
        %v1350 = vadd.f32 %v1348, %v1349
        %v1351 = vadd.f32 %v1350, 0.0
        %v1352 = vmul.f32 %v1322, %v1322
        %v1353 = vmul.f32 %v1323, %v1323
        %v1354 = vmul.f32 %v1324, %v1324
        %v1355 = vmul.f32 %v1325, %v1325
        %v1356 = vmul.f32 %v1326, %v1326
        %v1357 = vmul.f32 %v1327, %v1327
        %v1358 = vmul.f32 %v1328, %v1328
        %v1359 = vmul.f32 %v1329, %v1329
        %v1360 = vadd.f32 %v1352, %v1353
        %v1361 = vadd.f32 %v1360, %v1354
        %v1362 = vadd.f32 %v1361, %v1355
        %v1363 = vadd.f32 %v1362, %v1356
        %v1364 = vadd.f32 %v1363, %v1357
        %v1365 = vadd.f32 %v1364, %v1358
        %v1366 = vadd.f32 %v1365, %v1359
        %v1367 = vrot.slane %v1366, 4
        %v1368 = vadd.f32 %v1366, %v1367
        %v1369 = vrot.slane %v1368, 2
        %v1370 = vadd.f32 %v1368, %v1369
        %v1371 = vrot.slane %v1370, 1
        %v1372 = vadd.f32 %v1370, %v1371
        %v1373 = vadd.f32 %v1372, 0.0
        %1374 = vst [vmem:[#allocation2 + $0x3] sm:$0xff] %v1094
        %1375 = vst [vmem:[#allocation2 + $0xb] sm:$0xff] %v1095
        %1376 = vst [vmem:[#allocation2 + $0x13] sm:$0xff] %v1096
        %1377 = vst [vmem:[#allocation2 + $0x1b] sm:$0xff] %v1097
        %1378 = vst [vmem:[#allocation2 + $0x23] sm:$0xff] %v1098
        %1379 = vst [vmem:[#allocation2 + $0x2b] sm:$0xff] %v1099
        %1380 = vst [vmem:[#allocation2 + $0x33] sm:$0xff] %v1100
        %1381 = vst [vmem:[#allocation2 + $0x3b] sm:$0xff] %v1101
        %v1382 = vld [vmem:[#allocation2] sm:$0xff]
        %v1383 = vld [vmem:[#allocation2 + $0x8] sm:$0xff]
        %v1384 = vld [vmem:[#allocation2 + $0x10] sm:$0xff]
        %v1385 = vld [vmem:[#allocation2 + $0x18] sm:$0xff]
        %v1386 = vld [vmem:[#allocation2 + $0x20] sm:$0xff]
        %v1387 = vld [vmem:[#allocation2 + $0x28] sm:$0xff]
        %v1388 = vld [vmem:[#allocation2 + $0x30] sm:$0xff]
        %v1389 = vld [vmem:[#allocation2 + $0x38] sm:$0xff]
        %v1390 = vmul.f32 %v1382, %v1139
        %v1391 = vmul.f32 %v1383, %v1139
        %v1392 = vmul.f32 %v1384, %v1139
        %v1393 = vmul.f32 %v1385, %v1139
        %v1394 = vmul.f32 %v1386, %v1139
        %v1395 = vmul.f32 %v1387, %v1139
        %v1396 = vmul.f32 %v1388, %v1139
        %v1397 = vmul.f32 %v1389, %v1139
        %v1398 = vld [vmem:[#allocation2 + $0x1] sm:$0xff]
        %v1399 = vld [vmem:[#allocation2 + $0x9] sm:$0xff]
        %v1400 = vld [vmem:[#allocation2 + $0x11] sm:$0xff]
        %v1401 = vld [vmem:[#allocation2 + $0x19] sm:$0xff]
        %v1402 = vld [vmem:[#allocation2 + $0x21] sm:$0xff]
        %v1403 = vld [vmem:[#allocation2 + $0x29] sm:$0xff]
        %v1404 = vld [vmem:[#allocation2 + $0x31] sm:$0xff]
        %v1405 = vld [vmem:[#allocation2 + $0x39] sm:$0xff]
        %v1406 = vmul.f32 %v1398, %v1159
        %v1407 = vmul.f32 %v1399, %v1159
        %v1408 = vmul.f32 %v1400, %v1159
        %v1409 = vmul.f32 %v1401, %v1159
        %v1410 = vmul.f32 %v1402, %v1159
        %v1411 = vmul.f32 %v1403, %v1159
        %v1412 = vmul.f32 %v1404, %v1159
        %v1413 = vmul.f32 %v1405, %v1159
        %v1414 = vadd.f32 %v1390, %v1406
        %v1415 = vadd.f32 %v1391, %v1407
        %v1416 = vadd.f32 %v1392, %v1408
        %v1417 = vadd.f32 %v1393, %v1409
        %v1418 = vadd.f32 %v1394, %v1410
        %v1419 = vadd.f32 %v1395, %v1411
        %v1420 = vadd.f32 %v1396, %v1412
        %v1421 = vadd.f32 %v1397, %v1413
        %v1422 = vld [vmem:[#allocation2 + $0x2] sm:$0xff]
        %v1423 = vld [vmem:[#allocation2 + $0xa] sm:$0xff]
        %v1424 = vld [vmem:[#allocation2 + $0x12] sm:$0xff]
        %v1425 = vld [vmem:[#allocation2 + $0x1a] sm:$0xff]
        %v1426 = vld [vmem:[#allocation2 + $0x22] sm:$0xff]
        %v1427 = vld [vmem:[#allocation2 + $0x2a] sm:$0xff]
        %v1428 = vld [vmem:[#allocation2 + $0x32] sm:$0xff]
        %v1429 = vld [vmem:[#allocation2 + $0x3a] sm:$0xff]
        %v1430 = vmul.f32 %v1422, %v1187
        %v1431 = vmul.f32 %v1423, %v1187
        %v1432 = vmul.f32 %v1424, %v1187
        %v1433 = vmul.f32 %v1425, %v1187
        %v1434 = vmul.f32 %v1426, %v1187
        %v1435 = vmul.f32 %v1427, %v1187
        %v1436 = vmul.f32 %v1428, %v1187
        %v1437 = vmul.f32 %v1429, %v1187
        %v1438 = vadd.f32 %v1414, %v1430
        %v1439 = vadd.f32 %v1415, %v1431
        %v1440 = vadd.f32 %v1416, %v1432
        %v1441 = vadd.f32 %v1417, %v1433
        %v1442 = vadd.f32 %v1418, %v1434
        %v1443 = vadd.f32 %v1419, %v1435
        %v1444 = vadd.f32 %v1420, %v1436
        %v1445 = vadd.f32 %v1421, %v1437
        %v1446 = vld [vmem:[#allocation2 + $0x3] sm:$0xff]
        %v1447 = vld [vmem:[#allocation2 + $0xb] sm:$0xff]
        %v1448 = vld [vmem:[#allocation2 + $0x13] sm:$0xff]
        %v1449 = vld [vmem:[#allocation2 + $0x1b] sm:$0xff]
        %v1450 = vld [vmem:[#allocation2 + $0x23] sm:$0xff]
        %v1451 = vld [vmem:[#allocation2 + $0x2b] sm:$0xff]
        %v1452 = vld [vmem:[#allocation2 + $0x33] sm:$0xff]
        %v1453 = vld [vmem:[#allocation2 + $0x3b] sm:$0xff]
        %v1454 = vmul.f32 %v1446, %v1215
        %v1455 = vmul.f32 %v1447, %v1215
        %v1456 = vmul.f32 %v1448, %v1215
        %v1457 = vmul.f32 %v1449, %v1215
        %v1458 = vmul.f32 %v1450, %v1215
        %v1459 = vmul.f32 %v1451, %v1215
        %v1460 = vmul.f32 %v1452, %v1215
        %v1461 = vmul.f32 %v1453, %v1215
        %v1462 = vadd.f32 %v1438, %v1454
        %v1463 = vadd.f32 %v1439, %v1455
        %v1464 = vadd.f32 %v1440, %v1456
        %v1465 = vadd.f32 %v1441, %v1457
        %v1466 = vadd.f32 %v1442, %v1458
        %v1467 = vadd.f32 %v1443, %v1459
        %v1468 = vadd.f32 %v1444, %v1460
        %v1469 = vadd.f32 %v1445, %v1461
        %v1470 = vld [vmem:[#allocation2 + $0x4] sm:$0xff]
        %v1471 = vld [vmem:[#allocation2 + $0xc] sm:$0xff]
        %v1472 = vld [vmem:[#allocation2 + $0x14] sm:$0xff]
        %v1473 = vld [vmem:[#allocation2 + $0x1c] sm:$0xff]
        %v1474 = vld [vmem:[#allocation2 + $0x24] sm:$0xff]
        %v1475 = vld [vmem:[#allocation2 + $0x2c] sm:$0xff]
        %v1476 = vld [vmem:[#allocation2 + $0x34] sm:$0xff]
        %v1477 = vld [vmem:[#allocation2 + $0x3c] sm:$0xff]
        %v1478 = vmul.f32 %v1470, %v1243
        %v1479 = vmul.f32 %v1471, %v1243
        %v1480 = vmul.f32 %v1472, %v1243
        %v1481 = vmul.f32 %v1473, %v1243
        %v1482 = vmul.f32 %v1474, %v1243
        %v1483 = vmul.f32 %v1475, %v1243
        %v1484 = vmul.f32 %v1476, %v1243
        %v1485 = vmul.f32 %v1477, %v1243
        %v1486 = vadd.f32 %v1462, %v1478
        %v1487 = vadd.f32 %v1463, %v1479
        %v1488 = vadd.f32 %v1464, %v1480
        %v1489 = vadd.f32 %v1465, %v1481
        %v1490 = vadd.f32 %v1466, %v1482
        %v1491 = vadd.f32 %v1467, %v1483
        %v1492 = vadd.f32 %v1468, %v1484
        %v1493 = vadd.f32 %v1469, %v1485
        %v1494 = vld [vmem:[#allocation2 + $0x5] sm:$0xff]
        %v1495 = vld [vmem:[#allocation2 + $0xd] sm:$0xff]
        %v1496 = vld [vmem:[#allocation2 + $0x15] sm:$0xff]
        %v1497 = vld [vmem:[#allocation2 + $0x1d] sm:$0xff]
        %v1498 = vld [vmem:[#allocation2 + $0x25] sm:$0xff]
        %v1499 = vld [vmem:[#allocation2 + $0x2d] sm:$0xff]
        %v1500 = vld [vmem:[#allocation2 + $0x35] sm:$0xff]
        %v1501 = vld [vmem:[#allocation2 + $0x3d] sm:$0xff]
        %v1502 = vmul.f32 %v1494, %v1271
        %v1503 = vmul.f32 %v1495, %v1271
        %v1504 = vmul.f32 %v1496, %v1271
        %v1505 = vmul.f32 %v1497, %v1271
        %v1506 = vmul.f32 %v1498, %v1271
        %v1507 = vmul.f32 %v1499, %v1271
        %v1508 = vmul.f32 %v1500, %v1271
        %v1509 = vmul.f32 %v1501, %v1271
        %v1510 = vadd.f32 %v1486, %v1502
        %v1511 = vadd.f32 %v1487, %v1503
        %v1512 = vadd.f32 %v1488, %v1504
        %v1513 = vadd.f32 %v1489, %v1505
        %v1514 = vadd.f32 %v1490, %v1506
        %v1515 = vadd.f32 %v1491, %v1507
        %v1516 = vadd.f32 %v1492, %v1508
        %v1517 = vadd.f32 %v1493, %v1509
        %v1518 = vld [vmem:[#allocation2 + $0x6] sm:$0xff]
        %v1519 = vld [vmem:[#allocation2 + $0xe] sm:$0xff]
        %v1520 = vld [vmem:[#allocation2 + $0x16] sm:$0xff]
        %v1521 = vld [vmem:[#allocation2 + $0x1e] sm:$0xff]
        %v1522 = vld [vmem:[#allocation2 + $0x26] sm:$0xff]
        %v1523 = vld [vmem:[#allocation2 + $0x2e] sm:$0xff]
        %v1524 = vld [vmem:[#allocation2 + $0x36] sm:$0xff]
        %v1525 = vld [vmem:[#allocation2 + $0x3e] sm:$0xff]
        %v1526 = vmul.f32 %v1518, %v1299
        %v1527 = vmul.f32 %v1519, %v1299
        %v1528 = vmul.f32 %v1520, %v1299
        %v1529 = vmul.f32 %v1521, %v1299
        %v1530 = vmul.f32 %v1522, %v1299
        %v1531 = vmul.f32 %v1523, %v1299
        %v1532 = vmul.f32 %v1524, %v1299
        %v1533 = vmul.f32 %v1525, %v1299
        %v1534 = vadd.f32 %v1510, %v1526
        %v1535 = vadd.f32 %v1511, %v1527
        %v1536 = vadd.f32 %v1512, %v1528
        %v1537 = vadd.f32 %v1513, %v1529
        %v1538 = vadd.f32 %v1514, %v1530
        %v1539 = vadd.f32 %v1515, %v1531
        %v1540 = vadd.f32 %v1516, %v1532
        %v1541 = vadd.f32 %v1517, %v1533
        %v1542 = vadd.f32 %v1534, %v1320
        %v1543 = vadd.f32 %v1535, %v1320
        %v1544 = vadd.f32 %v1536, %v1320
        %v1545 = vadd.f32 %v1537, %v1320
        %v1546 = vadd.f32 %v1538, %v1320
        %v1547 = vadd.f32 %v1539, %v1320
        %v1548 = vadd.f32 %v1540, %v1320
        %v1549 = vadd.f32 %v1541, %v1320
        %1550 = vst [vmem:[%s362 + $0x40] sm:$0xff] %v1542
        %1551 = vst [vmem:[%s362 + $0x48] sm:$0xff] %v1543
        %1552 = vst [vmem:[%s362 + $0x50] sm:$0xff] %v1544
        %1553 = vst [vmem:[%s362 + $0x58] sm:$0xff] %v1545
        %1554 = vst [vmem:[%s362 + $0x60] sm:$0xff] %v1546
        %1555 = vst [vmem:[%s362 + $0x68] sm:$0xff] %v1547
        %1556 = vst [vmem:[%s362 + $0x70] sm:$0xff] %v1548
        %1557 = vst [vmem:[%s362 + $0x78] sm:$0xff] %v1549
        %v1558 = vadd.f32 %v1542, %v1543
        %v1559 = vadd.f32 %v1558, %v1544
        %v1560 = vadd.f32 %v1559, %v1545
        %v1561 = vadd.f32 %v1560, %v1546
        %v1562 = vadd.f32 %v1561, %v1547
        %v1563 = vadd.f32 %v1562, %v1548
        %v1564 = vadd.f32 %v1563, %v1549
        %v1565 = vrot.slane %v1564, 4
        %v1566 = vadd.f32 %v1564, %v1565
        %v1567 = vrot.slane %v1566, 2
        %v1568 = vadd.f32 %v1566, %v1567
        %v1569 = vrot.slane %v1568, 1
        %v1570 = vadd.f32 %v1568, %v1569
        %v1571 = vadd.f32 %v1351, %v1570
        %v1572 = vmul.f32 %v1542, %v1542
        %v1573 = vmul.f32 %v1543, %v1543
        %v1574 = vmul.f32 %v1544, %v1544
        %v1575 = vmul.f32 %v1545, %v1545
        %v1576 = vmul.f32 %v1546, %v1546
        %v1577 = vmul.f32 %v1547, %v1547
        %v1578 = vmul.f32 %v1548, %v1548
        %v1579 = vmul.f32 %v1549, %v1549
        %v1580 = vadd.f32 %v1572, %v1573
        %v1581 = vadd.f32 %v1580, %v1574
        %v1582 = vadd.f32 %v1581, %v1575
        %v1583 = vadd.f32 %v1582, %v1576
        %v1584 = vadd.f32 %v1583, %v1577
        %v1585 = vadd.f32 %v1584, %v1578
        %v1586 = vadd.f32 %v1585, %v1579
        %v1587 = vrot.slane %v1586, 4
        %v1588 = vadd.f32 %v1586, %v1587
        %v1589 = vrot.slane %v1588, 2
        %v1590 = vadd.f32 %v1588, %v1589
        %v1591 = vrot.slane %v1590, 1
        %v1592 = vadd.f32 %v1590, %v1591
        %v1593 = vadd.f32 %v1373, %v1592
        %1594 = vst [vmem:[#allocation2 + $0x3] sm:$0xff] %v1102
        %1595 = vst [vmem:[#allocation2 + $0xb] sm:$0xff] %v1103
        %1596 = vst [vmem:[#allocation2 + $0x13] sm:$0xff] %v1104
        %1597 = vst [vmem:[#allocation2 + $0x1b] sm:$0xff] %v1105
        %1598 = vst [vmem:[#allocation2 + $0x23] sm:$0xff] %v1106
        %1599 = vst [vmem:[#allocation2 + $0x2b] sm:$0xff] %v1107
        %1600 = vst [vmem:[#allocation2 + $0x33] sm:$0xff] %v1108
        %1601 = vst [vmem:[#allocation2 + $0x3b] sm:$0xff] %v1109
        %v1602 = vld [vmem:[#allocation2] sm:$0xff]
        %v1603 = vld [vmem:[#allocation2 + $0x8] sm:$0xff]
        %v1604 = vld [vmem:[#allocation2 + $0x10] sm:$0xff]
        %v1605 = vld [vmem:[#allocation2 + $0x18] sm:$0xff]
        %v1606 = vld [vmem:[#allocation2 + $0x20] sm:$0xff]
        %v1607 = vld [vmem:[#allocation2 + $0x28] sm:$0xff]
        %v1608 = vld [vmem:[#allocation2 + $0x30] sm:$0xff]
        %v1609 = vld [vmem:[#allocation2 + $0x38] sm:$0xff]
        %v1610 = vmul.f32 %v1602, %v1139
        %v1611 = vmul.f32 %v1603, %v1139
        %v1612 = vmul.f32 %v1604, %v1139
        %v1613 = vmul.f32 %v1605, %v1139
        %v1614 = vmul.f32 %v1606, %v1139
        %v1615 = vmul.f32 %v1607, %v1139
        %v1616 = vmul.f32 %v1608, %v1139
        %v1617 = vmul.f32 %v1609, %v1139
        %v1618 = vld [vmem:[#allocation2 + $0x1] sm:$0xff]
        %v1619 = vld [vmem:[#allocation2 + $0x9] sm:$0xff]
        %v1620 = vld [vmem:[#allocation2 + $0x11] sm:$0xff]
        %v1621 = vld [vmem:[#allocation2 + $0x19] sm:$0xff]
        %v1622 = vld [vmem:[#allocation2 + $0x21] sm:$0xff]
        %v1623 = vld [vmem:[#allocation2 + $0x29] sm:$0xff]
        %v1624 = vld [vmem:[#allocation2 + $0x31] sm:$0xff]
        %v1625 = vld [vmem:[#allocation2 + $0x39] sm:$0xff]
        %v1626 = vmul.f32 %v1618, %v1159
        %v1627 = vmul.f32 %v1619, %v1159
        %v1628 = vmul.f32 %v1620, %v1159
        %v1629 = vmul.f32 %v1621, %v1159
        %v1630 = vmul.f32 %v1622, %v1159
        %v1631 = vmul.f32 %v1623, %v1159
        %v1632 = vmul.f32 %v1624, %v1159
        %v1633 = vmul.f32 %v1625, %v1159
        %v1634 = vadd.f32 %v1610, %v1626
        %v1635 = vadd.f32 %v1611, %v1627
        %v1636 = vadd.f32 %v1612, %v1628
        %v1637 = vadd.f32 %v1613, %v1629
        %v1638 = vadd.f32 %v1614, %v1630
        %v1639 = vadd.f32 %v1615, %v1631
        %v1640 = vadd.f32 %v1616, %v1632
        %v1641 = vadd.f32 %v1617, %v1633
        %v1642 = vld [vmem:[#allocation2 + $0x2] sm:$0xff]
        %v1643 = vld [vmem:[#allocation2 + $0xa] sm:$0xff]
        %v1644 = vld [vmem:[#allocation2 + $0x12] sm:$0xff]
        %v1645 = vld [vmem:[#allocation2 + $0x1a] sm:$0xff]
        %v1646 = vld [vmem:[#allocation2 + $0x22] sm:$0xff]
        %v1647 = vld [vmem:[#allocation2 + $0x2a] sm:$0xff]
        %v1648 = vld [vmem:[#allocation2 + $0x32] sm:$0xff]
        %v1649 = vld [vmem:[#allocation2 + $0x3a] sm:$0xff]
        %v1650 = vmul.f32 %v1642, %v1187
        %v1651 = vmul.f32 %v1643, %v1187
        %v1652 = vmul.f32 %v1644, %v1187
        %v1653 = vmul.f32 %v1645, %v1187
        %v1654 = vmul.f32 %v1646, %v1187
        %v1655 = vmul.f32 %v1647, %v1187
        %v1656 = vmul.f32 %v1648, %v1187
        %v1657 = vmul.f32 %v1649, %v1187
        %v1658 = vadd.f32 %v1634, %v1650
        %v1659 = vadd.f32 %v1635, %v1651
        %v1660 = vadd.f32 %v1636, %v1652
        %v1661 = vadd.f32 %v1637, %v1653
        %v1662 = vadd.f32 %v1638, %v1654
        %v1663 = vadd.f32 %v1639, %v1655
        %v1664 = vadd.f32 %v1640, %v1656
        %v1665 = vadd.f32 %v1641, %v1657
        %v1666 = vld [vmem:[#allocation2 + $0x3] sm:$0xff]
        %v1667 = vld [vmem:[#allocation2 + $0xb] sm:$0xff]
        %v1668 = vld [vmem:[#allocation2 + $0x13] sm:$0xff]
        %v1669 = vld [vmem:[#allocation2 + $0x1b] sm:$0xff]
        %v1670 = vld [vmem:[#allocation2 + $0x23] sm:$0xff]
        %v1671 = vld [vmem:[#allocation2 + $0x2b] sm:$0xff]
        %v1672 = vld [vmem:[#allocation2 + $0x33] sm:$0xff]
        %v1673 = vld [vmem:[#allocation2 + $0x3b] sm:$0xff]
        %v1674 = vmul.f32 %v1666, %v1215
        %v1675 = vmul.f32 %v1667, %v1215
        %v1676 = vmul.f32 %v1668, %v1215
        %v1677 = vmul.f32 %v1669, %v1215
        %v1678 = vmul.f32 %v1670, %v1215
        %v1679 = vmul.f32 %v1671, %v1215
        %v1680 = vmul.f32 %v1672, %v1215
        %v1681 = vmul.f32 %v1673, %v1215
        %v1682 = vadd.f32 %v1658, %v1674
        %v1683 = vadd.f32 %v1659, %v1675
        %v1684 = vadd.f32 %v1660, %v1676
        %v1685 = vadd.f32 %v1661, %v1677
        %v1686 = vadd.f32 %v1662, %v1678
        %v1687 = vadd.f32 %v1663, %v1679
        %v1688 = vadd.f32 %v1664, %v1680
        %v1689 = vadd.f32 %v1665, %v1681
        %v1690 = vld [vmem:[#allocation2 + $0x4] sm:$0xff]
        %v1691 = vld [vmem:[#allocation2 + $0xc] sm:$0xff]
        %v1692 = vld [vmem:[#allocation2 + $0x14] sm:$0xff]
        %v1693 = vld [vmem:[#allocation2 + $0x1c] sm:$0xff]
        %v1694 = vld [vmem:[#allocation2 + $0x24] sm:$0xff]
        %v1695 = vld [vmem:[#allocation2 + $0x2c] sm:$0xff]
        %v1696 = vld [vmem:[#allocation2 + $0x34] sm:$0xff]
        %v1697 = vld [vmem:[#allocation2 + $0x3c] sm:$0xff]
        %v1698 = vmul.f32 %v1690, %v1243
        %v1699 = vmul.f32 %v1691, %v1243
        %v1700 = vmul.f32 %v1692, %v1243
        %v1701 = vmul.f32 %v1693, %v1243
        %v1702 = vmul.f32 %v1694, %v1243
        %v1703 = vmul.f32 %v1695, %v1243
        %v1704 = vmul.f32 %v1696, %v1243
        %v1705 = vmul.f32 %v1697, %v1243
        %v1706 = vadd.f32 %v1682, %v1698
        %v1707 = vadd.f32 %v1683, %v1699
        %v1708 = vadd.f32 %v1684, %v1700
        %v1709 = vadd.f32 %v1685, %v1701
        %v1710 = vadd.f32 %v1686, %v1702
        %v1711 = vadd.f32 %v1687, %v1703
        %v1712 = vadd.f32 %v1688, %v1704
        %v1713 = vadd.f32 %v1689, %v1705
        %v1714 = vld [vmem:[#allocation2 + $0x5] sm:$0xff]
        %v1715 = vld [vmem:[#allocation2 + $0xd] sm:$0xff]
        %v1716 = vld [vmem:[#allocation2 + $0x15] sm:$0xff]
        %v1717 = vld [vmem:[#allocation2 + $0x1d] sm:$0xff]
        %v1718 = vld [vmem:[#allocation2 + $0x25] sm:$0xff]
        %v1719 = vld [vmem:[#allocation2 + $0x2d] sm:$0xff]
        %v1720 = vld [vmem:[#allocation2 + $0x35] sm:$0xff]
        %v1721 = vld [vmem:[#allocation2 + $0x3d] sm:$0xff]
        %v1722 = vmul.f32 %v1714, %v1271
        %v1723 = vmul.f32 %v1715, %v1271
        %v1724 = vmul.f32 %v1716, %v1271
        %v1725 = vmul.f32 %v1717, %v1271
        %v1726 = vmul.f32 %v1718, %v1271
        %v1727 = vmul.f32 %v1719, %v1271
        %v1728 = vmul.f32 %v1720, %v1271
        %v1729 = vmul.f32 %v1721, %v1271
        %v1730 = vadd.f32 %v1706, %v1722
        %v1731 = vadd.f32 %v1707, %v1723
        %v1732 = vadd.f32 %v1708, %v1724
        %v1733 = vadd.f32 %v1709, %v1725
        %v1734 = vadd.f32 %v1710, %v1726
        %v1735 = vadd.f32 %v1711, %v1727
        %v1736 = vadd.f32 %v1712, %v1728
        %v1737 = vadd.f32 %v1713, %v1729
        %v1738 = vld [vmem:[#allocation2 + $0x6] sm:$0xff]
        %v1739 = vld [vmem:[#allocation2 + $0xe] sm:$0xff]
        %v1740 = vld [vmem:[#allocation2 + $0x16] sm:$0xff]
        %v1741 = vld [vmem:[#allocation2 + $0x1e] sm:$0xff]
        %v1742 = vld [vmem:[#allocation2 + $0x26] sm:$0xff]
        %v1743 = vld [vmem:[#allocation2 + $0x2e] sm:$0xff]
        %v1744 = vld [vmem:[#allocation2 + $0x36] sm:$0xff]
        %v1745 = vld [vmem:[#allocation2 + $0x3e] sm:$0xff]
        %v1746 = vmul.f32 %v1738, %v1299
        %v1747 = vmul.f32 %v1739, %v1299
        %v1748 = vmul.f32 %v1740, %v1299
        %v1749 = vmul.f32 %v1741, %v1299
        %v1750 = vmul.f32 %v1742, %v1299
        %v1751 = vmul.f32 %v1743, %v1299
        %v1752 = vmul.f32 %v1744, %v1299
        %v1753 = vmul.f32 %v1745, %v1299
        %v1754 = vadd.f32 %v1730, %v1746
        %v1755 = vadd.f32 %v1731, %v1747
        %v1756 = vadd.f32 %v1732, %v1748
        %v1757 = vadd.f32 %v1733, %v1749
        %v1758 = vadd.f32 %v1734, %v1750
        %v1759 = vadd.f32 %v1735, %v1751
        %v1760 = vadd.f32 %v1736, %v1752
        %v1761 = vadd.f32 %v1737, %v1753
        %v1762 = vadd.f32 %v1754, %v1320
        %v1763 = vadd.f32 %v1755, %v1320
        %v1764 = vadd.f32 %v1756, %v1320
        %v1765 = vadd.f32 %v1757, %v1320
        %v1766 = vadd.f32 %v1758, %v1320
        %v1767 = vadd.f32 %v1759, %v1320
        %v1768 = vadd.f32 %v1760, %v1320
        %v1769 = vadd.f32 %v1761, %v1320
        %1770 = vst [vmem:[%s362 + $0x80] sm:$0xff] %v1762
        %1771 = vst [vmem:[%s362 + $0x88] sm:$0xff] %v1763
        %1772 = vst [vmem:[%s362 + $0x90] sm:$0xff] %v1764
        %1773 = vst [vmem:[%s362 + $0x98] sm:$0xff] %v1765
        %1774 = vst [vmem:[%s362 + $0xa0] sm:$0xff] %v1766
        %1775 = vst [vmem:[%s362 + $0xa8] sm:$0xff] %v1767
        %1776 = vst [vmem:[%s362 + $0xb0] sm:$0xff] %v1768
        %1777 = vst [vmem:[%s362 + $0xb8] sm:$0xff] %v1769
        %v1778 = vadd.f32 %v1762, %v1763
        %v1779 = vadd.f32 %v1778, %v1764
        %v1780 = vadd.f32 %v1779, %v1765
        %v1781 = vadd.f32 %v1780, %v1766
        %v1782 = vadd.f32 %v1781, %v1767
        %v1783 = vadd.f32 %v1782, %v1768
        %v1784 = vadd.f32 %v1783, %v1769
        %v1785 = vrot.slane %v1784, 4
        %v1786 = vadd.f32 %v1784, %v1785
        %v1787 = vrot.slane %v1786, 2
        %v1788 = vadd.f32 %v1786, %v1787
        %v1789 = vrot.slane %v1788, 1
        %v1790 = vadd.f32 %v1788, %v1789
        %v1791 = vadd.f32 %v1571, %v1790
        %v1792 = vmul.f32 %v1762, %v1762
        %v1793 = vmul.f32 %v1763, %v1763
        %v1794 = vmul.f32 %v1764, %v1764
        %v1795 = vmul.f32 %v1765, %v1765
        %v1796 = vmul.f32 %v1766, %v1766
        %v1797 = vmul.f32 %v1767, %v1767
        %v1798 = vmul.f32 %v1768, %v1768
        %v1799 = vmul.f32 %v1769, %v1769
        %v1800 = vadd.f32 %v1792, %v1793
        %v1801 = vadd.f32 %v1800, %v1794
        %v1802 = vadd.f32 %v1801, %v1795
        %v1803 = vadd.f32 %v1802, %v1796
        %v1804 = vadd.f32 %v1803, %v1797
        %v1805 = vadd.f32 %v1804, %v1798
        %v1806 = vadd.f32 %v1805, %v1799
        %v1807 = vrot.slane %v1806, 4
        %v1808 = vadd.f32 %v1806, %v1807
        %v1809 = vrot.slane %v1808, 2
        %v1810 = vadd.f32 %v1808, %v1809
        %v1811 = vrot.slane %v1810, 1
        %v1812 = vadd.f32 %v1810, %v1811
        %v1813 = vadd.f32 %v1593, %v1812
        %1814 = vst [vmem:[#allocation2 + $0x3] sm:$0xff] %v1110
        %1815 = vst [vmem:[#allocation2 + $0xb] sm:$0xff] %v1111
        %1816 = vst [vmem:[#allocation2 + $0x13] sm:$0xff] %v1112
        %1817 = vst [vmem:[#allocation2 + $0x1b] sm:$0xff] %v1113
        %1818 = vst [vmem:[#allocation2 + $0x23] sm:$0xff] %v1114
        %1819 = vst [vmem:[#allocation2 + $0x2b] sm:$0xff] %v1115
        %1820 = vst [vmem:[#allocation2 + $0x33] sm:$0xff] %v1116
        %1821 = vst [vmem:[#allocation2 + $0x3b] sm:$0xff] %v1117
        %v1822 = vld [vmem:[#allocation2] sm:$0xff]
        %v1823 = vld [vmem:[#allocation2 + $0x8] sm:$0xff]
        %v1824 = vld [vmem:[#allocation2 + $0x10] sm:$0xff]
        %v1825 = vld [vmem:[#allocation2 + $0x18] sm:$0xff]
        %v1826 = vld [vmem:[#allocation2 + $0x20] sm:$0xff]
        %v1827 = vld [vmem:[#allocation2 + $0x28] sm:$0xff]
        %v1828 = vld [vmem:[#allocation2 + $0x30] sm:$0xff]
        %v1829 = vld [vmem:[#allocation2 + $0x38] sm:$0xff]
        %v1830 = vmul.f32 %v1822, %v1139
        %v1831 = vmul.f32 %v1823, %v1139
        %v1832 = vmul.f32 %v1824, %v1139
        %v1833 = vmul.f32 %v1825, %v1139
        %v1834 = vmul.f32 %v1826, %v1139
        %v1835 = vmul.f32 %v1827, %v1139
        %v1836 = vmul.f32 %v1828, %v1139
        %v1837 = vmul.f32 %v1829, %v1139
        %v1838 = vld [vmem:[#allocation2 + $0x1] sm:$0xff]
        %v1839 = vld [vmem:[#allocation2 + $0x9] sm:$0xff]
        %v1840 = vld [vmem:[#allocation2 + $0x11] sm:$0xff]
        %v1841 = vld [vmem:[#allocation2 + $0x19] sm:$0xff]
        %v1842 = vld [vmem:[#allocation2 + $0x21] sm:$0xff]
        %v1843 = vld [vmem:[#allocation2 + $0x29] sm:$0xff]
        %v1844 = vld [vmem:[#allocation2 + $0x31] sm:$0xff]
        %v1845 = vld [vmem:[#allocation2 + $0x39] sm:$0xff]
        %v1846 = vmul.f32 %v1838, %v1159
        %v1847 = vmul.f32 %v1839, %v1159
        %v1848 = vmul.f32 %v1840, %v1159
        %v1849 = vmul.f32 %v1841, %v1159
        %v1850 = vmul.f32 %v1842, %v1159
        %v1851 = vmul.f32 %v1843, %v1159
        %v1852 = vmul.f32 %v1844, %v1159
        %v1853 = vmul.f32 %v1845, %v1159
        %v1854 = vadd.f32 %v1830, %v1846
        %v1855 = vadd.f32 %v1831, %v1847
        %v1856 = vadd.f32 %v1832, %v1848
        %v1857 = vadd.f32 %v1833, %v1849
        %v1858 = vadd.f32 %v1834, %v1850
        %v1859 = vadd.f32 %v1835, %v1851
        %v1860 = vadd.f32 %v1836, %v1852
        %v1861 = vadd.f32 %v1837, %v1853
        %v1862 = vld [vmem:[#allocation2 + $0x2] sm:$0xff]
        %v1863 = vld [vmem:[#allocation2 + $0xa] sm:$0xff]
        %v1864 = vld [vmem:[#allocation2 + $0x12] sm:$0xff]
        %v1865 = vld [vmem:[#allocation2 + $0x1a] sm:$0xff]
        %v1866 = vld [vmem:[#allocation2 + $0x22] sm:$0xff]
        %v1867 = vld [vmem:[#allocation2 + $0x2a] sm:$0xff]
        %v1868 = vld [vmem:[#allocation2 + $0x32] sm:$0xff]
        %v1869 = vld [vmem:[#allocation2 + $0x3a] sm:$0xff]
        %v1870 = vmul.f32 %v1862, %v1187
        %v1871 = vmul.f32 %v1863, %v1187
        %v1872 = vmul.f32 %v1864, %v1187
        %v1873 = vmul.f32 %v1865, %v1187
        %v1874 = vmul.f32 %v1866, %v1187
        %v1875 = vmul.f32 %v1867, %v1187
        %v1876 = vmul.f32 %v1868, %v1187
        %v1877 = vmul.f32 %v1869, %v1187
        %v1878 = vadd.f32 %v1854, %v1870
        %v1879 = vadd.f32 %v1855, %v1871
        %v1880 = vadd.f32 %v1856, %v1872
        %v1881 = vadd.f32 %v1857, %v1873
        %v1882 = vadd.f32 %v1858, %v1874
        %v1883 = vadd.f32 %v1859, %v1875
        %v1884 = vadd.f32 %v1860, %v1876
        %v1885 = vadd.f32 %v1861, %v1877
        %v1886 = vld [vmem:[#allocation2 + $0x3] sm:$0xff]
        %v1887 = vld [vmem:[#allocation2 + $0xb] sm:$0xff]
        %v1888 = vld [vmem:[#allocation2 + $0x13] sm:$0xff]
        %v1889 = vld [vmem:[#allocation2 + $0x1b] sm:$0xff]
        %v1890 = vld [vmem:[#allocation2 + $0x23] sm:$0xff]
        %v1891 = vld [vmem:[#allocation2 + $0x2b] sm:$0xff]
        %v1892 = vld [vmem:[#allocation2 + $0x33] sm:$0xff]
        %v1893 = vld [vmem:[#allocation2 + $0x3b] sm:$0xff]
        %v1894 = vmul.f32 %v1886, %v1215
        %v1895 = vmul.f32 %v1887, %v1215
        %v1896 = vmul.f32 %v1888, %v1215
        %v1897 = vmul.f32 %v1889, %v1215
        %v1898 = vmul.f32 %v1890, %v1215
        %v1899 = vmul.f32 %v1891, %v1215
        %v1900 = vmul.f32 %v1892, %v1215
        %v1901 = vmul.f32 %v1893, %v1215
        %v1902 = vadd.f32 %v1878, %v1894
        %v1903 = vadd.f32 %v1879, %v1895
        %v1904 = vadd.f32 %v1880, %v1896
        %v1905 = vadd.f32 %v1881, %v1897
        %v1906 = vadd.f32 %v1882, %v1898
        %v1907 = vadd.f32 %v1883, %v1899
        %v1908 = vadd.f32 %v1884, %v1900
        %v1909 = vadd.f32 %v1885, %v1901
        %v1910 = vld [vmem:[#allocation2 + $0x4] sm:$0xff]
        %v1911 = vld [vmem:[#allocation2 + $0xc] sm:$0xff]
        %v1912 = vld [vmem:[#allocation2 + $0x14] sm:$0xff]
        %v1913 = vld [vmem:[#allocation2 + $0x1c] sm:$0xff]
        %v1914 = vld [vmem:[#allocation2 + $0x24] sm:$0xff]
        %v1915 = vld [vmem:[#allocation2 + $0x2c] sm:$0xff]
        %v1916 = vld [vmem:[#allocation2 + $0x34] sm:$0xff]
        %v1917 = vld [vmem:[#allocation2 + $0x3c] sm:$0xff]
        %v1918 = vmul.f32 %v1910, %v1243
        %v1919 = vmul.f32 %v1911, %v1243
        %v1920 = vmul.f32 %v1912, %v1243
        %v1921 = vmul.f32 %v1913, %v1243
        %v1922 = vmul.f32 %v1914, %v1243
        %v1923 = vmul.f32 %v1915, %v1243
        %v1924 = vmul.f32 %v1916, %v1243
        %v1925 = vmul.f32 %v1917, %v1243
        %v1926 = vadd.f32 %v1902, %v1918
        %v1927 = vadd.f32 %v1903, %v1919
        %v1928 = vadd.f32 %v1904, %v1920
        %v1929 = vadd.f32 %v1905, %v1921
        %v1930 = vadd.f32 %v1906, %v1922
        %v1931 = vadd.f32 %v1907, %v1923
        %v1932 = vadd.f32 %v1908, %v1924
        %v1933 = vadd.f32 %v1909, %v1925
        %v1934 = vld [vmem:[#allocation2 + $0x5] sm:$0xff]
        %v1935 = vld [vmem:[#allocation2 + $0xd] sm:$0xff]
        %v1936 = vld [vmem:[#allocation2 + $0x15] sm:$0xff]
        %v1937 = vld [vmem:[#allocation2 + $0x1d] sm:$0xff]
        %v1938 = vld [vmem:[#allocation2 + $0x25] sm:$0xff]
        %v1939 = vld [vmem:[#allocation2 + $0x2d] sm:$0xff]
        %v1940 = vld [vmem:[#allocation2 + $0x35] sm:$0xff]
        %v1941 = vld [vmem:[#allocation2 + $0x3d] sm:$0xff]
        %v1942 = vmul.f32 %v1934, %v1271
        %v1943 = vmul.f32 %v1935, %v1271
        %v1944 = vmul.f32 %v1936, %v1271
        %v1945 = vmul.f32 %v1937, %v1271
        %v1946 = vmul.f32 %v1938, %v1271
        %v1947 = vmul.f32 %v1939, %v1271
        %v1948 = vmul.f32 %v1940, %v1271
        %v1949 = vmul.f32 %v1941, %v1271
        %v1950 = vadd.f32 %v1926, %v1942
        %v1951 = vadd.f32 %v1927, %v1943
        %v1952 = vadd.f32 %v1928, %v1944
        %v1953 = vadd.f32 %v1929, %v1945
        %v1954 = vadd.f32 %v1930, %v1946
        %v1955 = vadd.f32 %v1931, %v1947
        %v1956 = vadd.f32 %v1932, %v1948
        %v1957 = vadd.f32 %v1933, %v1949
        %v1958 = vld [vmem:[#allocation2 + $0x6] sm:$0xff]
        %v1959 = vld [vmem:[#allocation2 + $0xe] sm:$0xff]
        %v1960 = vld [vmem:[#allocation2 + $0x16] sm:$0xff]
        %v1961 = vld [vmem:[#allocation2 + $0x1e] sm:$0xff]
        %v1962 = vld [vmem:[#allocation2 + $0x26] sm:$0xff]
        %v1963 = vld [vmem:[#allocation2 + $0x2e] sm:$0xff]
        %v1964 = vld [vmem:[#allocation2 + $0x36] sm:$0xff]
        %v1965 = vld [vmem:[#allocation2 + $0x3e] sm:$0xff]
        %v1966 = vmul.f32 %v1958, %v1299
        %v1967 = vmul.f32 %v1959, %v1299
        %v1968 = vmul.f32 %v1960, %v1299
        %v1969 = vmul.f32 %v1961, %v1299
        %v1970 = vmul.f32 %v1962, %v1299
        %v1971 = vmul.f32 %v1963, %v1299
        %v1972 = vmul.f32 %v1964, %v1299
        %v1973 = vmul.f32 %v1965, %v1299
        %v1974 = vadd.f32 %v1950, %v1966
        %v1975 = vadd.f32 %v1951, %v1967
        %v1976 = vadd.f32 %v1952, %v1968
        %v1977 = vadd.f32 %v1953, %v1969
        %v1978 = vadd.f32 %v1954, %v1970
        %v1979 = vadd.f32 %v1955, %v1971
        %v1980 = vadd.f32 %v1956, %v1972
        %v1981 = vadd.f32 %v1957, %v1973
        %v1982 = vadd.f32 %v1974, %v1320
        %v1983 = vadd.f32 %v1975, %v1320
        %v1984 = vadd.f32 %v1976, %v1320
        %v1985 = vadd.f32 %v1977, %v1320
        %v1986 = vadd.f32 %v1978, %v1320
        %v1987 = vadd.f32 %v1979, %v1320
        %v1988 = vadd.f32 %v1980, %v1320
        %v1989 = vadd.f32 %v1981, %v1320
        %1990 = vst [vmem:[%s362 + $0xc0] sm:$0xff] %v1982
        %1991 = vst [vmem:[%s362 + $0xc8] sm:$0xff] %v1983
        %1992 = vst [vmem:[%s362 + $0xd0] sm:$0xff] %v1984
        %1993 = vst [vmem:[%s362 + $0xd8] sm:$0xff] %v1985
        %1994 = vst [vmem:[%s362 + $0xe0] sm:$0xff] %v1986
        %1995 = vst [vmem:[%s362 + $0xe8] sm:$0xff] %v1987
        %1996 = vst [vmem:[%s362 + $0xf0] sm:$0xff] %v1988
        %1997 = vst [vmem:[%s362 + $0xf8] sm:$0xff] %v1989
        %v1998 = vadd.f32 %v1982, %v1983
        %v1999 = vadd.f32 %v1998, %v1984
        %v2000 = vadd.f32 %v1999, %v1985
        %v2001 = vadd.f32 %v2000, %v1986
        %v2002 = vadd.f32 %v2001, %v1987
        %v2003 = vadd.f32 %v2002, %v1988
        %v2004 = vadd.f32 %v2003, %v1989
        %v2005 = vrot.slane %v2004, 4
        %v2006 = vadd.f32 %v2004, %v2005
        %v2007 = vrot.slane %v2006, 2
        %v2008 = vadd.f32 %v2006, %v2007
        %v2009 = vrot.slane %v2008, 1
        %v2010 = vadd.f32 %v2008, %v2009
        %v2011 = vadd.f32 %v1791, %v2010
        %v2012 = vmul.f32 %v1982, %v1982
        %v2013 = vmul.f32 %v1983, %v1983
        %v2014 = vmul.f32 %v1984, %v1984
        %v2015 = vmul.f32 %v1985, %v1985
        %v2016 = vmul.f32 %v1986, %v1986
        %v2017 = vmul.f32 %v1987, %v1987
        %v2018 = vmul.f32 %v1988, %v1988
        %v2019 = vmul.f32 %v1989, %v1989
        %v2020 = vadd.f32 %v2012, %v2013
        %v2021 = vadd.f32 %v2020, %v2014
        %v2022 = vadd.f32 %v2021, %v2015
        %v2023 = vadd.f32 %v2022, %v2016
        %v2024 = vadd.f32 %v2023, %v2017
        %v2025 = vadd.f32 %v2024, %v2018
        %v2026 = vadd.f32 %v2025, %v2019
        %v2027 = vrot.slane %v2026, 4
        %v2028 = vadd.f32 %v2026, %v2027
        %v2029 = vrot.slane %v2028, 2
        %v2030 = vadd.f32 %v2028, %v2029
        %v2031 = vrot.slane %v2030, 1
        %v2032 = vadd.f32 %v2030, %v2031
        %v2033 = vadd.f32 %v1813, %v2032
        %v2034 = vld [vmem:[#allocation12] sm:$0x1]
        %v2035 = vadd.f32 %v2034, %v2011
        %2036 = vst [vmem:[#allocation12] sm:$0x1] %v2035
        %v2037 = vld [vmem:[#allocation12 + $0x1] sm:$0x1]
        %v2038 = vadd.f32 %v2037, %v2033
        %2039 = vst [vmem:[#allocation12 + $0x1] sm:$0x1] %v2038
        %s2040 = sand.u32 %s189, 1
        %s2041 = scalar_lea.sflag [#allocation5], %s2040
        %s2042 = sand.u32 %s189, 1
        %s2043 = smul.addr %s2042, 256
        %s2044 = scalar_lea.vmem [#allocation11], %s2043
        // Predicated region
        $region69: #{tpu_custom_call.1} parent=47 // pred_check
          %p2045 = pneg %p199
        $region70: #{tpu_custom_call.1} parent=47 // pred_check_branch
          %2047 = sbr.rel (%p2045) target = $region72
        $region71: #{tpu_custom_call.1} parent=47 // pred_region
          %s2048 = smul.u32 32, %s29
          %s2050 = ssub.s32 4096, 4096
          %2051 = vsyncadd %s2041, %s2050
          %s2052 = smul.addr %s2048, 128
          %s2053 = scalar_lea.hbm %s7, %s2052
          %s2054 = sshll.u32 %s2044, 4
          %s2055 = int_to_ptr.vmem [resolvable:$true] %s2054
          %2060 = dma.vmem_to_hbm [thread:$0]  %s2055, 4096, %s2053, %s2041, 128, 128, 8
        $region72: #{tpu_custom_call.1} parent=47 // pred_fallthru
          _
        // Predicated region
        $region73: #{tpu_custom_call.1} parent=47 // pred_check
          %p2061 = pneg %p220
        $region74: #{tpu_custom_call.1} parent=47 // pred_check_branch
          %2063 = sbr.rel (%p2061) target = $region76
        $region75: #{tpu_custom_call.1} parent=47 // pred_region
          %s2065 = ssub.s32 32, 32
          %2066 = vsyncadd [#allocation13], %s2065
          %s2068 = sshll.u32 [#allocation12], 4
          %s2069 = int_to_ptr.vmem [resolvable:$true] %s2068
          %2071 = dma.vmem_to_hbm [thread:$0]  %s2069, 32, %s8, [#allocation13]
        $region76: #{tpu_custom_call.1} parent=47 // pred_fallthru
          _
        // Predicated region
        $region77: #{tpu_custom_call.1} parent=47 // pred_check
          %p2072 = pneg %p220
        $region78: #{tpu_custom_call.1} parent=47 // pred_check_branch
          %2074 = sbr.rel (%p2072) target = $region80
        $region79: #{tpu_custom_call.1} parent=47 // pred_region
          %2075 = dma.done [#allocation13], 32
        $region80: #{tpu_custom_call.1} parent=47 // pred_fallthru
          _
      $region48: #{tpu_custom_call.1} parent=5 // pred_fallthru
        _
      %p2076 = scmp.le.s32.totalorder 2, %s24
      // Predicated region
      $region81: #{tpu_custom_call.1} parent=5 // pred_check
        %p2077 = pneg %p2076
      $region82: #{tpu_custom_call.1} parent=5 // pred_check_branch
        %2079 = sbr.rel (%p2077) target = $region84
      $region83: #{tpu_custom_call.1} parent=5 // pred_region
        %s2080 = ssub.s32 %s24, 2
        // Predicated region
        $region85: #{tpu_custom_call.1} parent=83 // pred_check
          %p2081 = pneg %p205
        $region86: #{tpu_custom_call.1} parent=83 // pred_check_branch
          %2083 = sbr.rel (%p2081) target = $region88
        $region87: #{tpu_custom_call.1} parent=83 // pred_region
          %s2084 = sand.u32 %s190, 1
          %s2085 = scalar_lea.sflag [#allocation5], %s2084
          %s2086 = sand.u32 %s190, 1
          %s2087 = smul.addr %s2086, 256
          %s2088 = scalar_lea.vmem [#allocation11], %s2087
          %2089 = dma.done %s2085, 4096
        $region88: #{tpu_custom_call.1} parent=83 // pred_fallthru
          _
      $region84: #{tpu_custom_call.1} parent=5 // pred_fallthru
        _
    $region6: #{tpu_custom_call.1} parent=1 // loop_footer
      %s28 = sadd.s32 1, %s24
    $region7: #{tpu_custom_call.1} parent=1 // loop_footer_branch
      %23 = sbr.rel target = $region3
    $region8: #{tpu_custom_call.1} parent=1 // loop_exit
      _
    %2090 = vsyncpa [#allocation4], 1
    %s2091 = scalar_lea.sflag [#allocation4], 1
    %2092 = vsyncpa %s2091, 1
    %2093 = vsyncpa [#allocation7], 1
    %2094 = vsyncpa [#allocation10], 1
    %2095 = vsyncpa [#allocation5], 1
    %s2096 = scalar_lea.sflag [#allocation5], 1
    %2097 = vsyncpa %s2096, 1
    %2098 = vsyncpa [#allocation13], 1

</llo_original>
